<compile_context>
chip_gen: v6e
topology: v6e:2x2x1
jax: 0.10.0
libtpu: 0.0.40
codegen_flags: <defaults>
</compile_context>

<pallas_src>
import jax
import jax.numpy as jnp
from jax.experimental import pallas as pl
from jax.experimental.pallas import tpu as pltpu

_VMEM = pl.BlockSpec(memory_space=pltpu.MemorySpace.VMEM)
_LANE = 128  # pad internal feature widths to one full vreg lane extent


# ---------------------------- fused Pallas kernel ----------------------------

def _encoder_kernel(a_ref, x_ref,
                    w1_ref, b1_ref, w2_ref, b2_ref, w3_ref, b3_ref,
                    wml_ref, bml_ref,
                    eps_ref, mask_ref,
                    fc1w_ref, fc1b_ref, fc2w_ref, fc2b_ref,
                    amvo_ref, mu_ref, logvar_ref, pmvo_ref,
                    x2_scratch):
    f32 = jnp.float32
    bf16 = jnp.bfloat16
    lat = mu_ref.shape[1]            # Drug_Features * 4 (true latent width)
    num_graphs = pmvo_ref.shape[0]

    a_bf = a_ref[...].astype(bf16)   # A_hat, reused by all 4 propagation steps

    def gcn(h, w_ref, b_ref, relu):
        # GCNConv: A_hat @ (H @ W) + b   (bf16 MXU inputs, fp32 accumulate)
        hw = jnp.dot(h.astype(bf16), w_ref[...].astype(bf16),
                     preferred_element_type=f32)
        out = jnp.dot(a_bf, hw.astype(bf16), preferred_element_type=f32)
        out = out + b_ref[...]
        if relu:
            out = jnp.maximum(out, 0.0)
        return out

    # --- three GCN layers (lane-padded to 128 features, fp32 activations) ---
    h = gcn(x_ref[...], w1_ref, b1_ref, relu=True)
    h = gcn(h, w2_ref, b2_ref, relu=True)
    h = gcn(h, w3_ref, b3_ref, relu=True)            # (N, 128), real width = lat

    # --- mu || logvar as one lane-dense matmul, then split ---
    ml = gcn(h, wml_ref, bml_ref, relu=False)        # (N, 2*lat)
    mu = ml[:, :lat]
    logvar = ml[:, lat:2 * lat]
    mu_ref[...] = mu
    logvar_ref[...] = logvar
    # reparameterize: z = mu + eps * exp(0.5 * logvar)  (fp32 on VPU/EUP)
    amvo_ref[...] = mu + eps_ref[...] * jnp.exp(0.5 * logvar)

    # --- global max pool over the nodes of each graph (direct row stores) ---
    m = mask_ref[...]                                # (N, G), 1.0 = member
    for g in range(num_graphs):                      # G is static and tiny
        col = m[:, g:g + 1]                          # (N, 1)
        masked = jnp.where(col > 0.0, h, f32(-1e30))
        x2_scratch[pl.ds(g, 1), :] = jnp.max(masked, axis=0, keepdims=True)
    x2 = x2_scratch[...]                             # (G, 128) padded

    # --- Drug_FCs: Linear -> ReLU -> Dropout(identity at inference) -> Linear
    z1 = jnp.dot(x2.astype(bf16), fc1w_ref[...].astype(bf16),
                 preferred_element_type=f32) + fc1b_ref[...]
    z1 = jnp.maximum(z1, 0.0)
    pmvo_ref[...] = jnp.dot(z1.astype(bf16), fc2w_ref[...].astype(bf16),
                            preferred_element_type=f32) + fc2b_ref[...]


# ---------------------------- wrapper ----------------------------

def _pad2(w, rows, cols):
    return jnp.pad(w, ((0, rows - w.shape[0]), (0, cols - w.shape[1])))


def _pad_bias(b, cols):
    b = b.reshape(1, -1)
    return jnp.pad(b, ((0, 0), (0, cols - b.shape[1])))


def encoder_forward(params, x, a_norm, mask_ng, eps):
    n = x.shape[0]
    g = mask_ng.shape[1]
    lat = params["mu_w"].shape[1]          # Drug_Features * 4
    final_dim = params["fc2_w"].shape[1]
    p = _LANE

    # lane-pad inputs / weights (zero padding is numerically neutral)
    x_p = _pad2(x, n, p)
    w1 = _pad2(params["gcn1_w"], p, p); b1 = _pad_bias(params["gcn1_b"], p)
    w2 = _pad2(params["gcn2_w"], p, p); b2 = _pad_bias(params["gcn2_b"], p)
    w3 = _pad2(params["gcn3_w"], p, p); b3 = _pad_bias(params["gcn3_b"], p)
    # mu || logvar concatenated along the output axis -> one lane-dense matmul
    wml = _pad2(jnp.concatenate([params["mu_w"], params["logvar_w"]], axis=1),
                p, 2 * lat)
    bml = jnp.concatenate([params["mu_b"], params["logvar_b"]]).reshape(1, -1)
    fc1w = _pad2(params["fc1_w"], p, params["fc1_w"].shape[1])
    fc1b = params["fc1_b"].reshape(1, -1)
    fc2w = params["fc2_w"]
    fc2b = params["fc2_b"].reshape(1, -1)

    out_shapes = (
        jax.ShapeDtypeStruct((n, lat), jnp.float32),        # AMVO (z)
        jax.ShapeDtypeStruct((n, lat), jnp.float32),        # mu
        jax.ShapeDtypeStruct((n, lat), jnp.float32),        # logvar
        jax.ShapeDtypeStruct((g, final_dim), jnp.float32),  # PMVO
    )

    return pl.pallas_call(
        _encoder_kernel,
        out_shape=out_shapes,
        in_specs=[_VMEM] * 16,
        out_specs=(_VMEM, _VMEM, _VMEM, _VMEM),
        scratch_shapes=[pltpu.VMEM((g, p), jnp.float32)],
    )(a_norm, x_p,
      w1, b1, w2, b2, w3, b3,
      wml, bml,
      eps, mask_ng,
      fc1w, fc1b, fc2w, fc2b)


# ---------------------------- glue (plain JAX) ----------------------------

def normalized_adjacency(edge_index, num_nodes):
    # A_hat = D^-1/2 (A + I) D^-1/2, dense, from a (2, E) edge_index.
    src, dst = edge_index[0], edge_index[1]
    a = jnp.zeros((num_nodes, num_nodes), jnp.float32).at[dst, src].set(1.0)
    a = a + jnp.eye(num_nodes, dtype=jnp.float32)        # self loops
    deg = a.sum(axis=1)
    dinv = jnp.where(deg > 0, 1.0 / jnp.sqrt(deg), 0.0)
    return dinv[:, None] * a * dinv[None, :]


def init_params(key, drug_features, final_dim):
    dims = [
        ("gcn1", drug_features, drug_features * 2),
        ("gcn2", drug_features * 2, drug_features * 3),
        ("gcn3", drug_features * 3, drug_features * 4),
        ("mu", drug_features * 4, drug_features * 4),
        ("logvar", drug_features * 4, drug_features * 4),
        ("fc1", drug_features * 4, 1024),
        ("fc2", 1024, final_dim),
    ]
    params = {}
    for name, d_in, d_out in dims:
        key, kw, kb = jax.random.split(key, 3)
        scale = 1.0 / jnp.sqrt(jnp.float32(d_in))
        params[name + "_w"] = jax.random.normal(kw, (d_in, d_out), jnp.float32) * scale
        params[name + "_b"] = jax.random.normal(kb, (d_out,), jnp.float32) * 0.01
    return params


if __name__ == "__main__":
    DRUG_FEATURES = 16
    FINAL_DIM = 32
    NUM_NODES = 16
    NUM_GRAPHS = 2

    key = jax.random.PRNGKey(0)
    key, kx, keps, kp = jax.random.split(key, 4)

    # node features [N, F]
    x = jax.random.normal(kx, (NUM_NODES, DRUG_FEATURES), jnp.float32)

    # two undirected chain graphs: nodes 0..9 -> graph 0, nodes 10..15 -> graph 1
    edges = []
    for start, end in [(0, 10), (10, 16)]:
        for i in range(start, end - 1):
            edges.append((i, i + 1))
            edges.append((i + 1, i))
    edge_index = jnp.array(edges, jnp.int32).T            # (2, E)
    batch = jnp.array([0] * 10 + [1] * 6, jnp.int32)       # (N,)

    a_norm = normalized_adjacency(edge_index, NUM_NODES)
    # membership mask [N, G] so the kernel broadcasts along lanes
    mask_ng = (batch[:, None] == jnp.arange(NUM_GRAPHS)[None, :]).astype(jnp.float32)

    # deterministic stand-in for torch.randn_like in reparameterize()
    eps = jax.random.normal(keps, (NUM_NODES, DRUG_FEATURES * 4), jnp.float32)

    params = init_params(kp, DRUG_FEATURES, FINAL_DIM)

    amvo, mu, logvar, pmvo = encoder_forward(params, x, a_norm, mask_ng, eps)
    jax.block_until_ready((amvo, mu, logvar, pmvo))

    assert amvo.shape == (NUM_NODES, DRUG_FEATURES * 4)
    assert mu.shape == (NUM_NODES, DRUG_FEATURES * 4)
    assert logvar.shape == (NUM_NODES, DRUG_FEATURES * 4)
    assert pmvo.shape == (NUM_GRAPHS, FINAL_DIM)
    assert bool(jnp.all(jnp.isfinite(amvo))) and bool(jnp.all(jnp.isfinite(pmvo)))
    print("KERNEL_OK")
</pallas_src>

<mosaic_0001>
module attributes {stable_mosaic.version = 11 : i64} {
  func.func @_encoder_kernel(%arg0: memref<16x16xf32, #tpu.memory_space<vmem>>, %arg1: memref<16x128xf32, #tpu.memory_space<vmem>>, %arg2: memref<128x128xf32, #tpu.memory_space<vmem>>, %arg3: memref<1x128xf32, #tpu.memory_space<vmem>>, %arg4: memref<128x128xf32, #tpu.memory_space<vmem>>, %arg5: memref<1x128xf32, #tpu.memory_space<vmem>>, %arg6: memref<128x128xf32, #tpu.memory_space<vmem>>, %arg7: memref<1x128xf32, #tpu.memory_space<vmem>>, %arg8: memref<128x128xf32, #tpu.memory_space<vmem>>, %arg9: memref<1x128xf32, #tpu.memory_space<vmem>>, %arg10: memref<16x64xf32, #tpu.memory_space<vmem>>, %arg11: memref<16x2xf32, #tpu.memory_space<vmem>>, %arg12: memref<128x1024xf32, #tpu.memory_space<vmem>>, %arg13: memref<1x1024xf32, #tpu.memory_space<vmem>>, %arg14: memref<1024x32xf32, #tpu.memory_space<vmem>>, %arg15: memref<1x32xf32, #tpu.memory_space<vmem>>, %arg16: memref<16x64xf32, #tpu.memory_space<vmem>>, %arg17: memref<16x64xf32, #tpu.memory_space<vmem>>, %arg18: memref<16x64xf32, #tpu.memory_space<vmem>>, %arg19: memref<2x32xf32, #tpu.memory_space<vmem>>, %arg20: memref<2x128xf32, #tpu.memory_space<vmem>>) attributes {dimension_semantics = [], scalar_prefetch = 0 : i64, scratch_operands = 1 : i64, tpu.core_type = #tpu.core_type<tc>} {
    %c0 = arith.constant 0 : index
    %c0_0 = arith.constant 0 : index
    %0 = vector.load %arg0[%c0, %c0_0] : memref<16x16xf32, #tpu.memory_space<vmem>>, vector<16x16xf32>
    %1 = arith.truncf %0 : vector<16x16xf32> to vector<16x16xbf16>
    %c0_1 = arith.constant 0 : index
    %c0_2 = arith.constant 0 : index
    %2 = vector.load %arg1[%c0_1, %c0_2] : memref<16x128xf32, #tpu.memory_space<vmem>>, vector<16x128xf32>
    %3 = arith.truncf %2 : vector<16x128xf32> to vector<16x128xbf16>
    %c0_3 = arith.constant 0 : index
    %c0_4 = arith.constant 0 : index
    %4 = vector.load %arg2[%c0_3, %c0_4] : memref<128x128xf32, #tpu.memory_space<vmem>>, vector<128x128xf32>
    %5 = arith.truncf %4 : vector<128x128xf32> to vector<128x128xbf16>
    %cst = arith.constant dense<0.000000e+00> : vector<16x128xf32>
    %6 = tpu.matmul %3, %5, %cst {dimension_numbers = #tpu.dot_dimension_numbers<[1], [0], [0], [1], [0, 0, 1, 1], [], []>} : vector<16x128xbf16>, vector<128x128xbf16>, vector<16x128xf32> -> vector<16x128xf32>
    %7 = arith.truncf %6 : vector<16x128xf32> to vector<16x128xbf16>
    %cst_5 = arith.constant dense<0.000000e+00> : vector<16x128xf32>
    %8 = tpu.matmul %1, %7, %cst_5 {dimension_numbers = #tpu.dot_dimension_numbers<[1], [0], [0], [1], [0, 0, 1, 1], [], []>} : vector<16x16xbf16>, vector<16x128xbf16>, vector<16x128xf32> -> vector<16x128xf32>
    %c0_6 = arith.constant 0 : index
    %c0_7 = arith.constant 0 : index
    %9 = vector.load %arg3[%c0_6, %c0_7] : memref<1x128xf32, #tpu.memory_space<vmem>>, vector<1x128xf32>
    %10 = vector.broadcast %9 : vector<1x128xf32> to vector<16x128xf32>
    %11 = arith.addf %8, %10 : vector<16x128xf32>
    %cst_8 = arith.constant 0.000000e+00 : f32
    %12 = vector.broadcast %cst_8 : f32 to vector<16x128xf32>
    %13 = arith.maximumf %11, %12 : vector<16x128xf32>
    %14 = arith.truncf %13 : vector<16x128xf32> to vector<16x128xbf16>
    %c0_9 = arith.constant 0 : index
    %c0_10 = arith.constant 0 : index
    %15 = vector.load %arg4[%c0_9, %c0_10] : memref<128x128xf32, #tpu.memory_space<vmem>>, vector<128x128xf32>
    %16 = arith.truncf %15 : vector<128x128xf32> to vector<128x128xbf16>
    %cst_11 = arith.constant dense<0.000000e+00> : vector<16x128xf32>
    %17 = tpu.matmul %14, %16, %cst_11 {dimension_numbers = #tpu.dot_dimension_numbers<[1], [0], [0], [1], [0, 0, 1, 1], [], []>} : vector<16x128xbf16>, vector<128x128xbf16>, vector<16x128xf32> -> vector<16x128xf32>
    %18 = arith.truncf %17 : vector<16x128xf32> to vector<16x128xbf16>
    %cst_12 = arith.constant dense<0.000000e+00> : vector<16x128xf32>
    %19 = tpu.matmul %1, %18, %cst_12 {dimension_numbers = #tpu.dot_dimension_numbers<[1], [0], [0], [1], [0, 0, 1, 1], [], []>} : vector<16x16xbf16>, vector<16x128xbf16>, vector<16x128xf32> -> vector<16x128xf32>
    %c0_13 = arith.constant 0 : index
    %c0_14 = arith.constant 0 : index
    %20 = vector.load %arg5[%c0_13, %c0_14] : memref<1x128xf32, #tpu.memory_space<vmem>>, vector<1x128xf32>
    %21 = vector.broadcast %20 : vector<1x128xf32> to vector<16x128xf32>
    %22 = arith.addf %19, %21 : vector<16x128xf32>
    %cst_15 = arith.constant 0.000000e+00 : f32
    %23 = vector.broadcast %cst_15 : f32 to vector<16x128xf32>
    %24 = arith.maximumf %22, %23 : vector<16x128xf32>
    %25 = arith.truncf %24 : vector<16x128xf32> to vector<16x128xbf16>
    %c0_16 = arith.constant 0 : index
    %c0_17 = arith.constant 0 : index
    %26 = vector.load %arg6[%c0_16, %c0_17] : memref<128x128xf32, #tpu.memory_space<vmem>>, vector<128x128xf32>
    %27 = arith.truncf %26 : vector<128x128xf32> to vector<128x128xbf16>
    %cst_18 = arith.constant dense<0.000000e+00> : vector<16x128xf32>
    %28 = tpu.matmul %25, %27, %cst_18 {dimension_numbers = #tpu.dot_dimension_numbers<[1], [0], [0], [1], [0, 0, 1, 1], [], []>} : vector<16x128xbf16>, vector<128x128xbf16>, vector<16x128xf32> -> vector<16x128xf32>
    %29 = arith.truncf %28 : vector<16x128xf32> to vector<16x128xbf16>
    %cst_19 = arith.constant dense<0.000000e+00> : vector<16x128xf32>
    %30 = tpu.matmul %1, %29, %cst_19 {dimension_numbers = #tpu.dot_dimension_numbers<[1], [0], [0], [1], [0, 0, 1, 1], [], []>} : vector<16x16xbf16>, vector<16x128xbf16>, vector<16x128xf32> -> vector<16x128xf32>
    %c0_20 = arith.constant 0 : index
    %c0_21 = arith.constant 0 : index
    %31 = vector.load %arg7[%c0_20, %c0_21] : memref<1x128xf32, #tpu.memory_space<vmem>>, vector<1x128xf32>
    %32 = vector.broadcast %31 : vector<1x128xf32> to vector<16x128xf32>
    %33 = arith.addf %30, %32 : vector<16x128xf32>
    %cst_22 = arith.constant 0.000000e+00 : f32
    %34 = vector.broadcast %cst_22 : f32 to vector<16x128xf32>
    %35 = arith.maximumf %33, %34 : vector<16x128xf32>
    %36 = arith.truncf %35 : vector<16x128xf32> to vector<16x128xbf16>
    %c0_23 = arith.constant 0 : index
    %c0_24 = arith.constant 0 : index
    %37 = vector.load %arg8[%c0_23, %c0_24] : memref<128x128xf32, #tpu.memory_space<vmem>>, vector<128x128xf32>
    %38 = arith.truncf %37 : vector<128x128xf32> to vector<128x128xbf16>
    %cst_25 = arith.constant dense<0.000000e+00> : vector<16x128xf32>
    %39 = tpu.matmul %36, %38, %cst_25 {dimension_numbers = #tpu.dot_dimension_numbers<[1], [0], [0], [1], [0, 0, 1, 1], [], []>} : vector<16x128xbf16>, vector<128x128xbf16>, vector<16x128xf32> -> vector<16x128xf32>
    %40 = arith.truncf %39 : vector<16x128xf32> to vector<16x128xbf16>
    %cst_26 = arith.constant dense<0.000000e+00> : vector<16x128xf32>
    %41 = tpu.matmul %1, %40, %cst_26 {dimension_numbers = #tpu.dot_dimension_numbers<[1], [0], [0], [1], [0, 0, 1, 1], [], []>} : vector<16x16xbf16>, vector<16x128xbf16>, vector<16x128xf32> -> vector<16x128xf32>
    %c0_27 = arith.constant 0 : index
    %c0_28 = arith.constant 0 : index
    %42 = vector.load %arg9[%c0_27, %c0_28] : memref<1x128xf32, #tpu.memory_space<vmem>>, vector<1x128xf32>
    %43 = vector.broadcast %42 : vector<1x128xf32> to vector<16x128xf32>
    %44 = arith.addf %41, %43 : vector<16x128xf32>
    %45 = vector.extract_strided_slice %44 {offsets = [0, 0], sizes = [16, 64], strides = [1, 1]} : vector<16x128xf32> to vector<16x64xf32>
    %46 = vector.extract_strided_slice %44 {offsets = [0, 64], sizes = [16, 64], strides = [1, 1]} : vector<16x128xf32> to vector<16x64xf32>
    %c0_29 = arith.constant 0 : index
    %c0_30 = arith.constant 0 : index
    %47 = vector.load %arg17[%c0_29, %c0_30] : memref<16x64xf32, #tpu.memory_space<vmem>>, vector<16x64xf32>
    tpu.vector_store %arg17[%c0_29, %c0_30], %45 {strides = array<i32>} : memref<16x64xf32, #tpu.memory_space<vmem>>, vector<16x64xf32>,
    %c0_31 = arith.constant 0 : index
    %c0_32 = arith.constant 0 : index
    %48 = vector.load %arg18[%c0_31, %c0_32] : memref<16x64xf32, #tpu.memory_space<vmem>>, vector<16x64xf32>
    tpu.vector_store %arg18[%c0_31, %c0_32], %46 {strides = array<i32>} : memref<16x64xf32, #tpu.memory_space<vmem>>, vector<16x64xf32>,
    %c0_33 = arith.constant 0 : index
    %c0_34 = arith.constant 0 : index
    %49 = vector.load %arg10[%c0_33, %c0_34] : memref<16x64xf32, #tpu.memory_space<vmem>>, vector<16x64xf32>
    %cst_35 = arith.constant 5.000000e-01 : f32
    %50 = vector.broadcast %cst_35 : f32 to vector<16x64xf32>
    %51 = arith.mulf %50, %46 : vector<16x64xf32>
    %52 = math.exp %51 : vector<16x64xf32>
    %53 = arith.mulf %49, %52 : vector<16x64xf32>
    %54 = arith.addf %45, %53 : vector<16x64xf32>
    %c0_36 = arith.constant 0 : index
    %c0_37 = arith.constant 0 : index
    %55 = vector.load %arg16[%c0_36, %c0_37] : memref<16x64xf32, #tpu.memory_space<vmem>>, vector<16x64xf32>
    tpu.vector_store %arg16[%c0_36, %c0_37], %54 {strides = array<i32>} : memref<16x64xf32, #tpu.memory_space<vmem>>, vector<16x64xf32>,
    %c0_38 = arith.constant 0 : index
    %c0_39 = arith.constant 0 : index
    %56 = vector.load %arg11[%c0_38, %c0_39] : memref<16x2xf32, #tpu.memory_space<vmem>>, vector<16x2xf32>
    %57 = vector.extract_strided_slice %56 {offsets = [0, 0], sizes = [16, 1], strides = [1, 1]} : vector<16x2xf32> to vector<16x1xf32>
    %cst_40 = arith.constant 0.000000e+00 : f32
    %58 = vector.broadcast %cst_40 : f32 to vector<16x1xf32>
    %59 = arith.cmpf ogt, %57, %58 : vector<16x1xf32>
    %cst_41 = arith.constant -1.000000e+30 : f32
    %60 = vector.shape_cast %59 : vector<16x1xi1> to vector<16x1xi1>
    %61 = vector.broadcast %60 : vector<16x1xi1> to vector<16x128xi1>
    %62 = vector.broadcast %cst_41 : f32 to vector<16x128xf32>
    %63 = arith.select %61, %35, %62 : vector<16x128xi1>, vector<16x128xf32>
    %cst_42 = arith.constant dense<0xFF800000> : vector<128xf32>
    %64 = vector.multi_reduction <maximumf>, %63, %cst_42 [0] : vector<16x128xf32> to vector<128xf32>
    %65 = vector.shape_cast %64 : vector<128xf32> to vector<1x128xf32>
    %c0_43 = arith.constant 0 : index
    %c0_44 = arith.constant 0 : index
    %66 = vector.load %arg20[%c0_43, %c0_44] : memref<2x128xf32, #tpu.memory_space<vmem>>, vector<1x128xf32>
    tpu.vector_store %arg20[%c0_43, %c0_44], %65 {strides = array<i32>} : memref<2x128xf32, #tpu.memory_space<vmem>>, vector<1x128xf32>,
    %67 = vector.extract_strided_slice %56 {offsets = [0, 1], sizes = [16, 1], strides = [1, 1]} : vector<16x2xf32> to vector<16x1xf32>
    %cst_45 = arith.constant 0.000000e+00 : f32
    %68 = vector.broadcast %cst_45 : f32 to vector<16x1xf32>
    %69 = arith.cmpf ogt, %67, %68 : vector<16x1xf32>
    %cst_46 = arith.constant -1.000000e+30 : f32
    %70 = vector.shape_cast %69 : vector<16x1xi1> to vector<16x1xi1>
    %71 = vector.broadcast %70 : vector<16x1xi1> to vector<16x128xi1>
    %72 = vector.broadcast %cst_46 : f32 to vector<16x128xf32>
    %73 = arith.select %71, %35, %72 : vector<16x128xi1>, vector<16x128xf32>
    %cst_47 = arith.constant dense<0xFF800000> : vector<128xf32>
    %74 = vector.multi_reduction <maximumf>, %73, %cst_47 [0] : vector<16x128xf32> to vector<128xf32>
    %75 = vector.shape_cast %74 : vector<128xf32> to vector<1x128xf32>
    %c1 = arith.constant 1 : index
    %c0_48 = arith.constant 0 : index
    %76 = vector.load %arg20[%c1, %c0_48] : memref<2x128xf32, #tpu.memory_space<vmem>>, vector<1x128xf32>
    tpu.vector_store %arg20[%c1, %c0_48], %75 {strides = array<i32>} : memref<2x128xf32, #tpu.memory_space<vmem>>, vector<1x128xf32>,
    %c0_49 = arith.constant 0 : index
    %c0_50 = arith.constant 0 : index
    %77 = vector.load %arg20[%c0_49, %c0_50] : memref<2x128xf32, #tpu.memory_space<vmem>>, vector<2x128xf32>
    %78 = arith.truncf %77 : vector<2x128xf32> to vector<2x128xbf16>
    %c0_51 = arith.constant 0 : index
    %c0_52 = arith.constant 0 : index
    %79 = vector.load %arg12[%c0_51, %c0_52] : memref<128x1024xf32, #tpu.memory_space<vmem>>, vector<128x1024xf32>
    %80 = arith.truncf %79 : vector<128x1024xf32> to vector<128x1024xbf16>
    %cst_53 = arith.constant dense<0.000000e+00> : vector<2x1024xf32>
    %81 = tpu.matmul %78, %80, %cst_53 {dimension_numbers = #tpu.dot_dimension_numbers<[1], [0], [0], [1], [0, 0, 1, 1], [], []>} : vector<2x128xbf16>, vector<128x1024xbf16>, vector<2x1024xf32> -> vector<2x1024xf32>
    %c0_54 = arith.constant 0 : index
    %c0_55 = arith.constant 0 : index
    %82 = vector.load %arg13[%c0_54, %c0_55] : memref<1x1024xf32, #tpu.memory_space<vmem>>, vector<1x1024xf32>
    %83 = vector.broadcast %82 : vector<1x1024xf32> to vector<2x1024xf32>
    %84 = arith.addf %81, %83 : vector<2x1024xf32>
    %cst_56 = arith.constant 0.000000e+00 : f32
    %85 = vector.broadcast %cst_56 : f32 to vector<2x1024xf32>
    %86 = arith.maximumf %84, %85 : vector<2x1024xf32>
    %87 = arith.truncf %86 : vector<2x1024xf32> to vector<2x1024xbf16>
    %c0_57 = arith.constant 0 : index
    %c0_58 = arith.constant 0 : index
    %88 = vector.load %arg14[%c0_57, %c0_58] : memref<1024x32xf32, #tpu.memory_space<vmem>>, vector<1024x32xf32>
    %89 = arith.truncf %88 : vector<1024x32xf32> to vector<1024x32xbf16>
    %cst_59 = arith.constant dense<0.000000e+00> : vector<2x32xf32>
    %90 = tpu.matmul %87, %89, %cst_59 {dimension_numbers = #tpu.dot_dimension_numbers<[1], [0], [0], [1], [0, 0, 1, 1], [], []>} : vector<2x1024xbf16>, vector<1024x32xbf16>, vector<2x32xf32> -> vector<2x32xf32>
    %c0_60 = arith.constant 0 : index
    %c0_61 = arith.constant 0 : index
    %91 = vector.load %arg15[%c0_60, %c0_61] : memref<1x32xf32, #tpu.memory_space<vmem>>, vector<1x32xf32>
    %92 = vector.broadcast %91 : vector<1x32xf32> to vector<2x32xf32>
    %93 = arith.addf %90, %92 : vector<2x32xf32>
    %c0_62 = arith.constant 0 : index
    %c0_63 = arith.constant 0 : index
    %94 = vector.load %arg19[%c0_62, %c0_63] : memref<2x32xf32, #tpu.memory_space<vmem>>, vector<2x32xf32>
    tpu.vector_store %arg19[%c0_62, %c0_63], %93 {strides = array<i32>} : memref<2x32xf32, #tpu.memory_space<vmem>>, vector<2x32xf32>,
    return
  }
}

</mosaic_0001>

<llo_original>
// kernel: tpu_custom_call.1
$region0: #{tpu_custom_call.1}
  #allocation0 [shape = 'u32[]', space=smem, size = 0x4, offset = 0x4, fixed_abs, tag = 'smem constant byte address 0x4 - core index']
  #allocation1 [shape = 'u32[144,128]{1,0:T(1,128)}', space=vmem, size = 0x12000, scoped, tag = 'internal scratch']
  #allocation2 [shape = 'f32[2,128]{1,0:T(2,128)}', space=vmem, size = 0x400, scoped, tag = 'scratch operand']
  %s0 = inlined_call_operand.vmem [shape: f32[16,16], index: 0, kind: input, shape index: {}]
  %s1 = inlined_call_operand.vmem [shape: f32[16,128], index: 1, kind: input, shape index: {}]
  %s2 = inlined_call_operand.vmem [shape: f32[128,128], index: 2, kind: input, shape index: {}]
  %s3 = inlined_call_operand.vmem [shape: f32[1,128], index: 3, kind: input, shape index: {}]
  %s4 = inlined_call_operand.vmem [shape: f32[128,128], index: 4, kind: input, shape index: {}]
  %s5 = inlined_call_operand.vmem [shape: f32[1,128], index: 5, kind: input, shape index: {}]
  %s6 = inlined_call_operand.hbm [shape: f32[128,128], index: 6, kind: input, shape index: {}]
  %s7 = inlined_call_operand.vmem [shape: f32[1,128], index: 7, kind: input, shape index: {}]
  %s8 = inlined_call_operand.hbm [shape: f32[128,128], index: 8, kind: input, shape index: {}]
  %s9 = inlined_call_operand.vmem [shape: f32[1,128], index: 9, kind: input, shape index: {}]
  %s10 = inlined_call_operand.hbm [shape: f32[16,64], index: 10, kind: input, shape index: {}]
  %s11 = inlined_call_operand.vmem [shape: f32[16,2], index: 11, kind: input, shape index: {}]
  %s12 = inlined_call_operand.vmem [shape: f32[128,1024], index: 12, kind: input, shape index: {}]
  %s13 = inlined_call_operand.hbm [shape: f32[1,1024], index: 13, kind: input, shape index: {}]
  %s14 = inlined_call_operand.vmem [shape: f32[1024,32], index: 14, kind: input, shape index: {}]
  %s15 = inlined_call_operand.vmem [shape: f32[1,32], index: 15, kind: input, shape index: {}]
  %s16 = inlined_call_operand.hbm [shape: f32[16,64], index: 16, kind: output, shape index: {0}]
  %s17 = inlined_call_operand.hbm [shape: f32[16,64], index: 17, kind: output, shape index: {1}]
  %s18 = inlined_call_operand.hbm [shape: f32[16,64], index: 18, kind: output, shape index: {2}]
  %s19 = inlined_call_operand.hbm [shape: f32[2,32], index: 19, kind: output, shape index: {3}]
  %20 = xla_tuple %s16, %s17, %s18, %s19
  %s21 = sld [smem:[#allocation0]]
  $region114: #{tpu_custom_call.1} parent=0
    _
  %s23 = ssub.s32 1, %s21
  %s24 = scalar_select 0, %s23, %s21
  $region1: #{tpu_custom_call.1} parent=0
    #allocation3 [shape = 'u8[65536]{0}', space=vmem, size = 0x10000, scoped, tag = 'input window, operand 6, single buffered']
    #allocation4 [shape = 's32[1]{0}', space=sflag, size = 0x4, scoped, tag = 'scoped memory for tpu_custom_call.1']
    #allocation5 [shape = 's32[1]{0}', space=sflag, size = 0x4, scoped, tag = 'scoped memory for tpu_custom_call.1']
    #allocation6 [shape = 'u8[65536]{0}', space=vmem, size = 0x10000, scoped, tag = 'input window, operand 8, single buffered']
    #allocation7 [shape = 's32[1]{0}', space=sflag, size = 0x4, scoped, tag = 'scoped memory for tpu_custom_call.1']
    #allocation8 [shape = 'u8[8192]{0}', space=vmem, size = 0x2000, scoped, tag = 'input window, operand 10, single buffered']
    #allocation9 [shape = 'u8[4096]{0}', space=vmem, size = 0x1000, scoped, tag = 'input window, operand 13, single buffered']
    #allocation10 [shape = 's32[1]{0}', space=sflag, size = 0x4, scoped, tag = 'scoped memory for tpu_custom_call.1']
    #allocation11 [shape = 'u8[8192]{0}', space=vmem, size = 0x2000, scoped, tag = 'output window, operand 0, single buffered']
    #allocation12 [shape = 'u8[8192]{0}', space=vmem, size = 0x2000, scoped, tag = 'output window, operand 1, single buffered']
    #allocation13 [shape = 's32[1]{0}', space=sflag, size = 0x4, scoped, tag = 'scoped memory for tpu_custom_call.1']
    #allocation14 [shape = 'u8[8192]{0}', space=vmem, size = 0x2000, scoped, tag = 'output window, operand 2, single buffered']
    #allocation15 [shape = 'u8[1024]{0}', space=vmem, size = 0x400, scoped, tag = 'output window, operand 3, single buffered']
    #allocation16 [shape = 's32[1]{0}', space=sflag, size = 0x4, scoped, tag = 'scoped memory for tpu_custom_call.1']
    %25 = vsyncpa [#allocation4], 0
    %26 = vsyncpa [#allocation7], 0
    %27 = vsyncpa [#allocation10], 0
    %28 = vsyncpa [#allocation5], 0
    %29 = vsyncpa [#allocation13], 0
    %30 = vsyncpa [#allocation16], 0
    // Predicated region
    $region2: #{tpu_custom_call.1} parent=1 // pred_check
      _
    $region3: #{tpu_custom_call.1} parent=1 // pred_check_branch
      %32 = sbr.rel (0) target = $region5
    $region4: #{tpu_custom_call.1} parent=1 // pred_region
      _
    $region5: #{tpu_custom_call.1} parent=1 // pred_fallthru
      _
    // Predicated region
    $region6: #{tpu_custom_call.1} parent=1 // pred_check
      _
    $region7: #{tpu_custom_call.1} parent=1 // pred_check_branch
      %34 = sbr.rel (0) target = $region9
    $region8: #{tpu_custom_call.1} parent=1 // pred_region
      _
    $region9: #{tpu_custom_call.1} parent=1 // pred_fallthru
      _
    // Predicated region
    $region10: #{tpu_custom_call.1} parent=1 // pred_check
      _
    $region11: #{tpu_custom_call.1} parent=1 // pred_check_branch
      %36 = sbr.rel (0) target = $region13
    $region12: #{tpu_custom_call.1} parent=1 // pred_region
      _
    $region13: #{tpu_custom_call.1} parent=1 // pred_fallthru
      _
    // Predicated region
    $region14: #{tpu_custom_call.1} parent=1 // pred_check
      _
    $region15: #{tpu_custom_call.1} parent=1 // pred_check_branch
      %38 = sbr.rel (0) target = $region17
    $region16: #{tpu_custom_call.1} parent=1 // pred_region
      _
    $region17: #{tpu_custom_call.1} parent=1 // pred_fallthru
      _
    // Predicated region
    $region18: #{tpu_custom_call.1} parent=1 // pred_check
      _
    $region19: #{tpu_custom_call.1} parent=1 // pred_check_branch
      %40 = sbr.rel (0) target = $region21
    $region20: #{tpu_custom_call.1} parent=1 // pred_region
      _
    $region21: #{tpu_custom_call.1} parent=1 // pred_fallthru
      _
    // Predicated region
    $region22: #{tpu_custom_call.1} parent=1 // pred_check
      _
    $region23: #{tpu_custom_call.1} parent=1 // pred_check_branch
      %42 = sbr.rel (0) target = $region25
    $region24: #{tpu_custom_call.1} parent=1 // pred_region
      _
    $region25: #{tpu_custom_call.1} parent=1 // pred_fallthru
      _
    // Predicated region
    $region26: #{tpu_custom_call.1} parent=1 // pred_check
      _
    $region27: #{tpu_custom_call.1} parent=1 // pred_check_branch
      %44 = sbr.rel (0) target = $region29
    $region28: #{tpu_custom_call.1} parent=1 // pred_region
      %s46 = ssub.s32 2048, 2048
      %47 = vsyncadd [#allocation4], %s46
      %s48 = sshll.u32 [#allocation3], 4
      %s49 = int_to_ptr.vmem [resolvable:$true] %s48
      %54 = dma.hbm_to_vmem [thread:$0]  %s6, 2048, %s49, [#allocation4], 128, 128, 8
    $region29: #{tpu_custom_call.1} parent=1 // pred_fallthru
      _
    // Predicated region
    $region30: #{tpu_custom_call.1} parent=1 // pred_check
      _
    $region31: #{tpu_custom_call.1} parent=1 // pred_check_branch
      %56 = sbr.rel (0) target = $region33
    $region32: #{tpu_custom_call.1} parent=1 // pred_region
      _
    $region33: #{tpu_custom_call.1} parent=1 // pred_fallthru
      _
    // Predicated region
    $region34: #{tpu_custom_call.1} parent=1 // pred_check
      _
    $region35: #{tpu_custom_call.1} parent=1 // pred_check_branch
      %58 = sbr.rel (0) target = $region37
    $region36: #{tpu_custom_call.1} parent=1 // pred_region
      %s60 = ssub.s32 2048, 2048
      %61 = vsyncadd [#allocation7], %s60
      %s62 = sshll.u32 [#allocation6], 4
      %s63 = int_to_ptr.vmem [resolvable:$true] %s62
      %68 = dma.hbm_to_vmem [thread:$0]  %s8, 2048, %s63, [#allocation7], 128, 128, 8
    $region37: #{tpu_custom_call.1} parent=1 // pred_fallthru
      _
    // Predicated region
    $region38: #{tpu_custom_call.1} parent=1 // pred_check
      _
    $region39: #{tpu_custom_call.1} parent=1 // pred_check_branch
      %70 = sbr.rel (0) target = $region41
    $region40: #{tpu_custom_call.1} parent=1 // pred_region
      _
    $region41: #{tpu_custom_call.1} parent=1 // pred_fallthru
      _
    // Predicated region
    $region42: #{tpu_custom_call.1} parent=1 // pred_check
      _
    $region43: #{tpu_custom_call.1} parent=1 // pred_check_branch
      %72 = sbr.rel (0) target = $region45
    $region44: #{tpu_custom_call.1} parent=1 // pred_region
      %s74 = ssub.s32 256, 256
      %75 = vsyncadd [#allocation7], %s74
      %s76 = sshll.u32 [#allocation8], 4
      %s77 = int_to_ptr.vmem [resolvable:$true] %s76
      %82 = dma.hbm_to_vmem [thread:$0]  %s10, 256, %s77, [#allocation7], 128, 128, 8
    $region45: #{tpu_custom_call.1} parent=1 // pred_fallthru
      _
    // Predicated region
    $region46: #{tpu_custom_call.1} parent=1 // pred_check
      _
    $region47: #{tpu_custom_call.1} parent=1 // pred_check_branch
      %84 = sbr.rel (0) target = $region49
    $region48: #{tpu_custom_call.1} parent=1 // pred_region
      _
    $region49: #{tpu_custom_call.1} parent=1 // pred_fallthru
      _
    // Predicated region
    $region50: #{tpu_custom_call.1} parent=1 // pred_check
      _
    $region51: #{tpu_custom_call.1} parent=1 // pred_check_branch
      %86 = sbr.rel (0) target = $region53
    $region52: #{tpu_custom_call.1} parent=1 // pred_region
      _
    $region53: #{tpu_custom_call.1} parent=1 // pred_fallthru
      _
    // Predicated region
    $region54: #{tpu_custom_call.1} parent=1 // pred_check
      _
    $region55: #{tpu_custom_call.1} parent=1 // pred_check_branch
      %88 = sbr.rel (0) target = $region57
    $region56: #{tpu_custom_call.1} parent=1 // pred_region
      %s90 = ssub.s32 128, 128
      %91 = vsyncadd [#allocation10], %s90
      %s93 = sshll.u32 [#allocation9], 4
      %s94 = int_to_ptr.vmem [resolvable:$true] %s93
      %96 = dma.hbm_to_vmem [thread:$0]  %s13, 128, %s94, [#allocation10]
    $region57: #{tpu_custom_call.1} parent=1 // pred_fallthru
      _
    // Predicated region
    $region58: #{tpu_custom_call.1} parent=1 // pred_check
      _
    $region59: #{tpu_custom_call.1} parent=1 // pred_check_branch
      %98 = sbr.rel (0) target = $region61
    $region60: #{tpu_custom_call.1} parent=1 // pred_region
      _
    $region61: #{tpu_custom_call.1} parent=1 // pred_fallthru
      _
    // Predicated region
    $region62: #{tpu_custom_call.1} parent=1 // pred_check
      _
    $region63: #{tpu_custom_call.1} parent=1 // pred_check_branch
      %100 = sbr.rel (0) target = $region65
    $region64: #{tpu_custom_call.1} parent=1 // pred_region
      _
    $region65: #{tpu_custom_call.1} parent=1 // pred_fallthru
      _
    // Predicated region
    $region66: #{tpu_custom_call.1} parent=1 // pred_check
      _
    $region67: #{tpu_custom_call.1} parent=1 // pred_check_branch
      %102 = sbr.rel (0) target = $region69
    $region68: #{tpu_custom_call.1} parent=1 // pred_region
      %103 = dma.done [#allocation4], 2048
    $region69: #{tpu_custom_call.1} parent=1 // pred_fallthru
      _
    // Predicated region
    $region70: #{tpu_custom_call.1} parent=1 // pred_check
      _
    $region71: #{tpu_custom_call.1} parent=1 // pred_check_branch
      %105 = sbr.rel (0) target = $region73
    $region72: #{tpu_custom_call.1} parent=1 // pred_region
      %106 = dma.done [#allocation7], 2048
    $region73: #{tpu_custom_call.1} parent=1 // pred_fallthru
      _
    // Predicated region
    $region74: #{tpu_custom_call.1} parent=1 // pred_check
      _
    $region75: #{tpu_custom_call.1} parent=1 // pred_check_branch
      %108 = sbr.rel (0) target = $region77
    $region76: #{tpu_custom_call.1} parent=1 // pred_region
      %109 = dma.done [#allocation7], 256
    $region77: #{tpu_custom_call.1} parent=1 // pred_fallthru
      _
    // Predicated region
    $region78: #{tpu_custom_call.1} parent=1 // pred_check
      _
    $region79: #{tpu_custom_call.1} parent=1 // pred_check_branch
      %111 = sbr.rel (0) target = $region81
    $region80: #{tpu_custom_call.1} parent=1 // pred_region
      %112 = dma.done [#allocation10], 128
    $region81: #{tpu_custom_call.1} parent=1 // pred_fallthru
      _
    %v114 = vld [vmem:[%s0] sm:$0xff]
    %v115 = vld [vmem:[%s0 + $0x8] sm:$0xff]
    %v116 = vpack.c.bf16 %v115, %v114
    %v117 = vld [vmem:[%s1] sm:$0xff]
    %v118 = vld [vmem:[%s1 + $0x8] sm:$0xff]
    %v119 = vpack.c.bf16 %v118, %v117
    %v120 = vld [vmem:[%s2] sm:$0xff]
    %v121 = vld [vmem:[%s2 + $0x8] sm:$0xff]
    %v122 = vld [vmem:[%s2 + $0x10] sm:$0xff]
    %v123 = vld [vmem:[%s2 + $0x18] sm:$0xff]
    %v124 = vld [vmem:[%s2 + $0x20] sm:$0xff]
    %v125 = vld [vmem:[%s2 + $0x28] sm:$0xff]
    %v126 = vld [vmem:[%s2 + $0x30] sm:$0xff]
    %v127 = vld [vmem:[%s2 + $0x38] sm:$0xff]
    %v128 = vld [vmem:[%s2 + $0x40] sm:$0xff]
    %v129 = vld [vmem:[%s2 + $0x48] sm:$0xff]
    %v130 = vld [vmem:[%s2 + $0x50] sm:$0xff]
    %v131 = vld [vmem:[%s2 + $0x58] sm:$0xff]
    %v132 = vld [vmem:[%s2 + $0x60] sm:$0xff]
    %v133 = vld [vmem:[%s2 + $0x68] sm:$0xff]
    %v134 = vld [vmem:[%s2 + $0x70] sm:$0xff]
    %v135 = vld [vmem:[%s2 + $0x78] sm:$0xff]
    %v136 = vpack.c.bf16 %v121, %v120
    %v137 = vpack.c.bf16 %v123, %v122
    %v138 = vpack.c.bf16 %v125, %v124
    %v139 = vpack.c.bf16 %v127, %v126
    %v140 = vpack.c.bf16 %v129, %v128
    %v141 = vpack.c.bf16 %v131, %v130
    %v142 = vpack.c.bf16 %v133, %v132
    %v143 = vpack.c.bf16 %v135, %v134
    %144 = vmatprep.subr.bf16.mxu0 0
    %145 = vmatpush1.bf16.msra.mxu0 %v143
    %146 = vmatprep.subr.bf16.mxu0 0
    %147 = vmatpush1.bf16.msra.mxu0 %v142
    %148 = vmatprep.subr.bf16.mxu0 0
    %149 = vmatpush1.bf16.msra.mxu0 %v141
    %150 = vmatprep.subr.bf16.mxu0 0
    %151 = vmatpush1.bf16.msra.mxu0 %v140
    %152 = vmatprep.subr.bf16.mxu0 0
    %153 = vmatpush1.bf16.msra.mxu0 %v139
    %154 = vmatprep.subr.bf16.mxu0 0
    %155 = vmatpush1.bf16.msra.mxu0 %v138
    %156 = vmatprep.subr.bf16.mxu0 0
    %157 = vmatpush1.bf16.msra.mxu0 %v137
    %158 = vmatprep.subr.bf16.mxu0 0
    %159 = vmatpush1.bf16.msra.mxu0 %v136
    %160 = vmatprep.subr.bf16.mxu0 0
    %161 = vmatpush2.bf16.msra.mxu0 0
    %162 = vmatprep.subr.bf16.mxu0 0
    %163 = vmatpush2.bf16.msra.mxu0 0
    %164 = vmatprep.subr.bf16.mxu0 0
    %165 = vmatpush2.bf16.msra.mxu0 0
    %166 = vmatprep.subr.bf16.mxu0 0
    %167 = vmatpush2.bf16.msra.mxu0 0
    %168 = vmatprep.subr.bf16.mxu0 0
    %169 = vmatpush2.bf16.msra.mxu0 0
    %170 = vmatprep.subr.bf16.mxu0 0
    %171 = vmatpush2.bf16.msra.mxu0 0
    %172 = vmatprep.subr.bf16.mxu0 0
    %173 = vmatpush2.bf16.msra.mxu0 0
    %174 = vmatprep.subr.bf16.mxu0 0
    %175 = vmatpush2.bf16.msra.mxu0 0
    %176 = vmatprep.mubr.bf16.mxu0 0
    %177 = vmatmul.mubr.bf16.gmra.mxu0 %v119
    %v178 = vpop.f32.mrf.mxu0
    %v179 = vadd.f32 0.0, %v178
    %v180 = vpop.f32.mrf.mxu0
    %v181 = vpop.f32.mrf.mxu0
    %v182 = vadd.f32 0.0, %v181
    %v183 = vpop.f32.mrf.mxu0
    %184 = vdwg.mxu0
    %v185 = vpack.c.bf16 %v182, %v179
    %v186 = vld [vmem:[%s3] sm:$0x1]
    %v188 = vlaneseq
    %v189 = vshrl.u32 %v188, 7
    %v190 = vsub.s32 0, %v189
    %v191 = vrot.slane %v186, %v190
    %vm193 = vcmask 130048
    %v195 = vsel %vm193, %v116, 0
    %197 = vmatprep.subr.bf16.mxu0 0
    %198 = vmatpush1.bf16.msra.mxu0 0
    %199 = vmatprep.subr.bf16.mxu0 0
    %200 = vmatpush1.bf16.msra.mxu0 0
    %201 = vmatprep.subr.bf16.mxu0 0
    %202 = vmatpush1.bf16.msra.mxu0 0
    %203 = vmatprep.subr.bf16.mxu0 0
    %204 = vmatpush1.bf16.msra.mxu0 0
    %205 = vmatprep.subr.bf16.mxu0 0
    %206 = vmatpush1.bf16.msra.mxu0 0
    %207 = vmatprep.subr.bf16.mxu0 0
    %208 = vmatpush1.bf16.msra.mxu0 0
    %209 = vmatprep.subr.bf16.mxu0 0
    %210 = vmatpush1.bf16.msra.mxu0 0
    %211 = vmatprep.subr.bf16.mxu0 0
    %212 = vmatpush1.bf16.msra.mxu0 %v185
    %213 = vmatprep.subr.bf16.mxu0 0
    %214 = vmatpush2.bf16.msra.mxu0 0
    %215 = vmatprep.subr.bf16.mxu0 0
    %216 = vmatpush2.bf16.msra.mxu0 0
    %217 = vmatprep.subr.bf16.mxu0 0
    %218 = vmatpush2.bf16.msra.mxu0 0
    %219 = vmatprep.subr.bf16.mxu0 0
    %220 = vmatpush2.bf16.msra.mxu0 0
    %221 = vmatprep.subr.bf16.mxu0 0
    %222 = vmatpush2.bf16.msra.mxu0 0
    %223 = vmatprep.subr.bf16.mxu0 0
    %224 = vmatpush2.bf16.msra.mxu0 0
    %225 = vmatprep.subr.bf16.mxu0 0
    %226 = vmatpush2.bf16.msra.mxu0 0
    %227 = vmatprep.subr.bf16.mxu0 0
    %228 = vmatpush2.bf16.msra.mxu0 0
    %229 = vmatprep.mubr.bf16.mxu0 0
    %230 = vmatmul.mubr.bf16.gmra.mxu0 %v195
    %v231 = vpop.f32.mrf.mxu0
    %v232 = vadd.f32 %v191, %v231
    %v233 = vpop.f32.mrf.mxu0
    %v234 = vpop.f32.mrf.mxu0
    %v235 = vadd.f32 %v191, %v234
    %v236 = vpop.f32.mrf.mxu0
    %237 = vdwg.mxu0
    %v238 = vmax.f32 %v232, 0.0
    %v239 = vmax.f32 %v235, 0.0
    %v240 = vpack.c.bf16 %v239, %v238
    %v241 = vld [vmem:[%s4] sm:$0xff]
    %v242 = vld [vmem:[%s4 + $0x8] sm:$0xff]
    %v243 = vld [vmem:[%s4 + $0x10] sm:$0xff]
    %v244 = vld [vmem:[%s4 + $0x18] sm:$0xff]
    %v245 = vld [vmem:[%s4 + $0x20] sm:$0xff]
    %v246 = vld [vmem:[%s4 + $0x28] sm:$0xff]
    %v247 = vld [vmem:[%s4 + $0x30] sm:$0xff]
    %v248 = vld [vmem:[%s4 + $0x38] sm:$0xff]
    %v249 = vld [vmem:[%s4 + $0x40] sm:$0xff]
    %v250 = vld [vmem:[%s4 + $0x48] sm:$0xff]
    %v251 = vld [vmem:[%s4 + $0x50] sm:$0xff]
    %v252 = vld [vmem:[%s4 + $0x58] sm:$0xff]
    %v253 = vld [vmem:[%s4 + $0x60] sm:$0xff]
    %v254 = vld [vmem:[%s4 + $0x68] sm:$0xff]
    %v255 = vld [vmem:[%s4 + $0x70] sm:$0xff]
    %v256 = vld [vmem:[%s4 + $0x78] sm:$0xff]
    %v257 = vpack.c.bf16 %v242, %v241
    %v258 = vpack.c.bf16 %v244, %v243
    %v259 = vpack.c.bf16 %v246, %v245
    %v260 = vpack.c.bf16 %v248, %v247
    %v261 = vpack.c.bf16 %v250, %v249
    %v262 = vpack.c.bf16 %v252, %v251
    %v263 = vpack.c.bf16 %v254, %v253
    %v264 = vpack.c.bf16 %v256, %v255
    %265 = vmatprep.subr.bf16.mxu0 0
    %266 = vmatpush1.bf16.msra.mxu0 %v264
    %267 = vmatprep.subr.bf16.mxu0 0
    %268 = vmatpush1.bf16.msra.mxu0 %v263
    %269 = vmatprep.subr.bf16.mxu0 0
    %270 = vmatpush1.bf16.msra.mxu0 %v262
    %271 = vmatprep.subr.bf16.mxu0 0
    %272 = vmatpush1.bf16.msra.mxu0 %v261
    %273 = vmatprep.subr.bf16.mxu0 0
    %274 = vmatpush1.bf16.msra.mxu0 %v260
    %275 = vmatprep.subr.bf16.mxu0 0
    %276 = vmatpush1.bf16.msra.mxu0 %v259
    %277 = vmatprep.subr.bf16.mxu0 0
    %278 = vmatpush1.bf16.msra.mxu0 %v258
    %279 = vmatprep.subr.bf16.mxu0 0
    %280 = vmatpush1.bf16.msra.mxu0 %v257
    %281 = vmatprep.subr.bf16.mxu0 0
    %282 = vmatpush2.bf16.msra.mxu0 0
    %283 = vmatprep.subr.bf16.mxu0 0
    %284 = vmatpush2.bf16.msra.mxu0 0
    %285 = vmatprep.subr.bf16.mxu0 0
    %286 = vmatpush2.bf16.msra.mxu0 0
    %287 = vmatprep.subr.bf16.mxu0 0
    %288 = vmatpush2.bf16.msra.mxu0 0
    %289 = vmatprep.subr.bf16.mxu0 0
    %290 = vmatpush2.bf16.msra.mxu0 0
    %291 = vmatprep.subr.bf16.mxu0 0
    %292 = vmatpush2.bf16.msra.mxu0 0
    %293 = vmatprep.subr.bf16.mxu0 0
    %294 = vmatpush2.bf16.msra.mxu0 0
    %295 = vmatprep.subr.bf16.mxu0 0
    %296 = vmatpush2.bf16.msra.mxu0 0
    %297 = vmatprep.mubr.bf16.mxu0 0
    %298 = vmatmul.mubr.bf16.gmra.mxu0 %v240
    %v299 = vpop.f32.mrf.mxu0
    %v300 = vadd.f32 0.0, %v299
    %v301 = vpop.f32.mrf.mxu0
    %v302 = vpop.f32.mrf.mxu0
    %v303 = vadd.f32 0.0, %v302
    %v304 = vpop.f32.mrf.mxu0
    %305 = vdwg.mxu0
    %v306 = vpack.c.bf16 %v303, %v300
    %v307 = vld [vmem:[%s5] sm:$0x1]
    %v309 = vlaneseq
    %v310 = vshrl.u32 %v309, 7
    %v311 = vsub.s32 0, %v310
    %v312 = vrot.slane %v307, %v311
    %314 = vmatprep.subr.bf16.mxu0 0
    %315 = vmatpush1.bf16.msra.mxu0 0
    %316 = vmatprep.subr.bf16.mxu0 0
    %317 = vmatpush1.bf16.msra.mxu0 0
    %318 = vmatprep.subr.bf16.mxu0 0
    %319 = vmatpush1.bf16.msra.mxu0 0
    %320 = vmatprep.subr.bf16.mxu0 0
    %321 = vmatpush1.bf16.msra.mxu0 0
    %322 = vmatprep.subr.bf16.mxu0 0
    %323 = vmatpush1.bf16.msra.mxu0 0
    %324 = vmatprep.subr.bf16.mxu0 0
    %325 = vmatpush1.bf16.msra.mxu0 0
    %326 = vmatprep.subr.bf16.mxu0 0
    %327 = vmatpush1.bf16.msra.mxu0 0
    %328 = vmatprep.subr.bf16.mxu0 0
    %329 = vmatpush1.bf16.msra.mxu0 %v306
    %330 = vmatprep.subr.bf16.mxu0 0
    %331 = vmatpush2.bf16.msra.mxu0 0
    %332 = vmatprep.subr.bf16.mxu0 0
    %333 = vmatpush2.bf16.msra.mxu0 0
    %334 = vmatprep.subr.bf16.mxu0 0
    %335 = vmatpush2.bf16.msra.mxu0 0
    %336 = vmatprep.subr.bf16.mxu0 0
    %337 = vmatpush2.bf16.msra.mxu0 0
    %338 = vmatprep.subr.bf16.mxu0 0
    %339 = vmatpush2.bf16.msra.mxu0 0
    %340 = vmatprep.subr.bf16.mxu0 0
    %341 = vmatpush2.bf16.msra.mxu0 0
    %342 = vmatprep.subr.bf16.mxu0 0
    %343 = vmatpush2.bf16.msra.mxu0 0
    %344 = vmatprep.subr.bf16.mxu0 0
    %345 = vmatpush2.bf16.msra.mxu0 0
    %346 = vmatprep.mubr.bf16.mxu0 0
    %347 = vmatmul.mubr.bf16.gmra.mxu0 %v195
    %v348 = vpop.f32.mrf.mxu0
    %v349 = vadd.f32 %v312, %v348
    %v350 = vpop.f32.mrf.mxu0
    %v351 = vpop.f32.mrf.mxu0
    %v352 = vadd.f32 %v312, %v351
    %v353 = vpop.f32.mrf.mxu0
    %354 = vdwg.mxu0
    %v355 = vmax.f32 %v349, 0.0
    %v356 = vmax.f32 %v352, 0.0
    %v357 = vpack.c.bf16 %v356, %v355
    %v358 = vld [vmem:[#allocation3] sm:$0xff]
    %v359 = vld [vmem:[#allocation3 + $0x8] sm:$0xff]
    %v360 = vld [vmem:[#allocation3 + $0x10] sm:$0xff]
    %v361 = vld [vmem:[#allocation3 + $0x18] sm:$0xff]
    %v362 = vld [vmem:[#allocation3 + $0x20] sm:$0xff]
    %v363 = vld [vmem:[#allocation3 + $0x28] sm:$0xff]
    %v364 = vld [vmem:[#allocation3 + $0x30] sm:$0xff]
    %v365 = vld [vmem:[#allocation3 + $0x38] sm:$0xff]
    %v366 = vld [vmem:[#allocation3 + $0x40] sm:$0xff]
    %v367 = vld [vmem:[#allocation3 + $0x48] sm:$0xff]
    %v368 = vld [vmem:[#allocation3 + $0x50] sm:$0xff]
    %v369 = vld [vmem:[#allocation3 + $0x58] sm:$0xff]
    %v370 = vld [vmem:[#allocation3 + $0x60] sm:$0xff]
    %v371 = vld [vmem:[#allocation3 + $0x68] sm:$0xff]
    %v372 = vld [vmem:[#allocation3 + $0x70] sm:$0xff]
    %v373 = vld [vmem:[#allocation3 + $0x78] sm:$0xff]
    %v374 = vpack.c.bf16 %v359, %v358
    %v375 = vpack.c.bf16 %v361, %v360
    %v376 = vpack.c.bf16 %v363, %v362
    %v377 = vpack.c.bf16 %v365, %v364
    %v378 = vpack.c.bf16 %v367, %v366
    %v379 = vpack.c.bf16 %v369, %v368
    %v380 = vpack.c.bf16 %v371, %v370
    %v381 = vpack.c.bf16 %v373, %v372
    %382 = vmatprep.subr.bf16.mxu0 0
    %383 = vmatpush1.bf16.msra.mxu0 %v381
    %384 = vmatprep.subr.bf16.mxu0 0
    %385 = vmatpush1.bf16.msra.mxu0 %v380
    %386 = vmatprep.subr.bf16.mxu0 0
    %387 = vmatpush1.bf16.msra.mxu0 %v379
    %388 = vmatprep.subr.bf16.mxu0 0
    %389 = vmatpush1.bf16.msra.mxu0 %v378
    %390 = vmatprep.subr.bf16.mxu0 0
    %391 = vmatpush1.bf16.msra.mxu0 %v377
    %392 = vmatprep.subr.bf16.mxu0 0
    %393 = vmatpush1.bf16.msra.mxu0 %v376
    %394 = vmatprep.subr.bf16.mxu0 0
    %395 = vmatpush1.bf16.msra.mxu0 %v375
    %396 = vmatprep.subr.bf16.mxu0 0
    %397 = vmatpush1.bf16.msra.mxu0 %v374
    %398 = vmatprep.subr.bf16.mxu0 0
    %399 = vmatpush2.bf16.msra.mxu0 0
    %400 = vmatprep.subr.bf16.mxu0 0
    %401 = vmatpush2.bf16.msra.mxu0 0
    %402 = vmatprep.subr.bf16.mxu0 0
    %403 = vmatpush2.bf16.msra.mxu0 0
    %404 = vmatprep.subr.bf16.mxu0 0
    %405 = vmatpush2.bf16.msra.mxu0 0
    %406 = vmatprep.subr.bf16.mxu0 0
    %407 = vmatpush2.bf16.msra.mxu0 0
    %408 = vmatprep.subr.bf16.mxu0 0
    %409 = vmatpush2.bf16.msra.mxu0 0
    %410 = vmatprep.subr.bf16.mxu0 0
    %411 = vmatpush2.bf16.msra.mxu0 0
    %412 = vmatprep.subr.bf16.mxu0 0
    %413 = vmatpush2.bf16.msra.mxu0 0
    %414 = vmatprep.mubr.bf16.mxu0 0
    %415 = vmatmul.mubr.bf16.gmra.mxu0 %v357
    %v416 = vpop.f32.mrf.mxu0
    %v417 = vadd.f32 0.0, %v416
    %v418 = vpop.f32.mrf.mxu0
    %v419 = vpop.f32.mrf.mxu0
    %v420 = vadd.f32 0.0, %v419
    %v421 = vpop.f32.mrf.mxu0
    %422 = vdwg.mxu0
    %v423 = vpack.c.bf16 %v420, %v417
    %v424 = vld [vmem:[%s7] sm:$0x1]
    %v426 = vlaneseq
    %v427 = vshrl.u32 %v426, 7
    %v428 = vsub.s32 0, %v427
    %v429 = vrot.slane %v424, %v428
    %431 = vmatprep.subr.bf16.mxu0 0
    %432 = vmatpush1.bf16.msra.mxu0 0
    %433 = vmatprep.subr.bf16.mxu0 0
    %434 = vmatpush1.bf16.msra.mxu0 0
    %435 = vmatprep.subr.bf16.mxu0 0
    %436 = vmatpush1.bf16.msra.mxu0 0
    %437 = vmatprep.subr.bf16.mxu0 0
    %438 = vmatpush1.bf16.msra.mxu0 0
    %439 = vmatprep.subr.bf16.mxu0 0
    %440 = vmatpush1.bf16.msra.mxu0 0
    %441 = vmatprep.subr.bf16.mxu0 0
    %442 = vmatpush1.bf16.msra.mxu0 0
    %443 = vmatprep.subr.bf16.mxu0 0
    %444 = vmatpush1.bf16.msra.mxu0 0
    %445 = vmatprep.subr.bf16.mxu0 0
    %446 = vmatpush1.bf16.msra.mxu0 %v423
    %447 = vmatprep.subr.bf16.mxu0 0
    %448 = vmatpush2.bf16.msra.mxu0 0
    %449 = vmatprep.subr.bf16.mxu0 0
    %450 = vmatpush2.bf16.msra.mxu0 0
    %451 = vmatprep.subr.bf16.mxu0 0
    %452 = vmatpush2.bf16.msra.mxu0 0
    %453 = vmatprep.subr.bf16.mxu0 0
    %454 = vmatpush2.bf16.msra.mxu0 0
    %455 = vmatprep.subr.bf16.mxu0 0
    %456 = vmatpush2.bf16.msra.mxu0 0
    %457 = vmatprep.subr.bf16.mxu0 0
    %458 = vmatpush2.bf16.msra.mxu0 0
    %459 = vmatprep.subr.bf16.mxu0 0
    %460 = vmatpush2.bf16.msra.mxu0 0
    %461 = vmatprep.subr.bf16.mxu0 0
    %462 = vmatpush2.bf16.msra.mxu0 0
    %463 = vmatprep.mubr.bf16.mxu0 0
    %464 = vmatmul.mubr.bf16.gmra.mxu0 %v195
    %v465 = vpop.f32.mrf.mxu0
    %v466 = vadd.f32 %v429, %v465
    %v467 = vpop.f32.mrf.mxu0
    %v468 = vpop.f32.mrf.mxu0
    %v469 = vadd.f32 %v429, %v468
    %v470 = vpop.f32.mrf.mxu0
    %471 = vdwg.mxu0
    %v472 = vmax.f32 %v466, 0.0
    %v473 = vmax.f32 %v469, 0.0
    %v474 = vpack.c.bf16 %v473, %v472
    %v475 = vld [vmem:[#allocation6] sm:$0xff]
    %v476 = vld [vmem:[#allocation6 + $0x8] sm:$0xff]
    %v477 = vld [vmem:[#allocation6 + $0x10] sm:$0xff]
    %v478 = vld [vmem:[#allocation6 + $0x18] sm:$0xff]
    %v479 = vld [vmem:[#allocation6 + $0x20] sm:$0xff]
    %v480 = vld [vmem:[#allocation6 + $0x28] sm:$0xff]
    %v481 = vld [vmem:[#allocation6 + $0x30] sm:$0xff]
    %v482 = vld [vmem:[#allocation6 + $0x38] sm:$0xff]
    %v483 = vld [vmem:[#allocation6 + $0x40] sm:$0xff]
    %v484 = vld [vmem:[#allocation6 + $0x48] sm:$0xff]
    %v485 = vld [vmem:[#allocation6 + $0x50] sm:$0xff]
    %v486 = vld [vmem:[#allocation6 + $0x58] sm:$0xff]
    %v487 = vld [vmem:[#allocation6 + $0x60] sm:$0xff]
    %v488 = vld [vmem:[#allocation6 + $0x68] sm:$0xff]
    %v489 = vld [vmem:[#allocation6 + $0x70] sm:$0xff]
    %v490 = vld [vmem:[#allocation6 + $0x78] sm:$0xff]
    %v491 = vpack.c.bf16 %v476, %v475
    %v492 = vpack.c.bf16 %v478, %v477
    %v493 = vpack.c.bf16 %v480, %v479
    %v494 = vpack.c.bf16 %v482, %v481
    %v495 = vpack.c.bf16 %v484, %v483
    %v496 = vpack.c.bf16 %v486, %v485
    %v497 = vpack.c.bf16 %v488, %v487
    %v498 = vpack.c.bf16 %v490, %v489
    %499 = vmatprep.subr.bf16.mxu0 0
    %500 = vmatpush1.bf16.msra.mxu0 %v498
    %501 = vmatprep.subr.bf16.mxu0 0
    %502 = vmatpush1.bf16.msra.mxu0 %v497
    %503 = vmatprep.subr.bf16.mxu0 0
    %504 = vmatpush1.bf16.msra.mxu0 %v496
    %505 = vmatprep.subr.bf16.mxu0 0
    %506 = vmatpush1.bf16.msra.mxu0 %v495
    %507 = vmatprep.subr.bf16.mxu0 0
    %508 = vmatpush1.bf16.msra.mxu0 %v494
    %509 = vmatprep.subr.bf16.mxu0 0
    %510 = vmatpush1.bf16.msra.mxu0 %v493
    %511 = vmatprep.subr.bf16.mxu0 0
    %512 = vmatpush1.bf16.msra.mxu0 %v492
    %513 = vmatprep.subr.bf16.mxu0 0
    %514 = vmatpush1.bf16.msra.mxu0 %v491
    %515 = vmatprep.subr.bf16.mxu0 0
    %516 = vmatpush2.bf16.msra.mxu0 0
    %517 = vmatprep.subr.bf16.mxu0 0
    %518 = vmatpush2.bf16.msra.mxu0 0
    %519 = vmatprep.subr.bf16.mxu0 0
    %520 = vmatpush2.bf16.msra.mxu0 0
    %521 = vmatprep.subr.bf16.mxu0 0
    %522 = vmatpush2.bf16.msra.mxu0 0
    %523 = vmatprep.subr.bf16.mxu0 0
    %524 = vmatpush2.bf16.msra.mxu0 0
    %525 = vmatprep.subr.bf16.mxu0 0
    %526 = vmatpush2.bf16.msra.mxu0 0
    %527 = vmatprep.subr.bf16.mxu0 0
    %528 = vmatpush2.bf16.msra.mxu0 0
    %529 = vmatprep.subr.bf16.mxu0 0
    %530 = vmatpush2.bf16.msra.mxu0 0
    %531 = vmatprep.mubr.bf16.mxu0 0
    %532 = vmatmul.mubr.bf16.gmra.mxu0 %v474
    %v533 = vpop.f32.mrf.mxu0
    %v534 = vadd.f32 0.0, %v533
    %v535 = vpop.f32.mrf.mxu0
    %v536 = vpop.f32.mrf.mxu0
    %v537 = vadd.f32 0.0, %v536
    %v538 = vpop.f32.mrf.mxu0
    %539 = vdwg.mxu0
    %v540 = vpack.c.bf16 %v537, %v534
    %v541 = vld [vmem:[%s9] sm:$0x1]
    %v543 = vlaneseq
    %v544 = vshrl.u32 %v543, 7
    %v545 = vsub.s32 0, %v544
    %v546 = vrot.slane %v541, %v545
    %548 = vmatprep.subr.bf16.mxu0 0
    %549 = vmatpush1.bf16.msra.mxu0 0
    %550 = vmatprep.subr.bf16.mxu0 0
    %551 = vmatpush1.bf16.msra.mxu0 0
    %552 = vmatprep.subr.bf16.mxu0 0
    %553 = vmatpush1.bf16.msra.mxu0 0
    %554 = vmatprep.subr.bf16.mxu0 0
    %555 = vmatpush1.bf16.msra.mxu0 0
    %556 = vmatprep.subr.bf16.mxu0 0
    %557 = vmatpush1.bf16.msra.mxu0 0
    %558 = vmatprep.subr.bf16.mxu0 0
    %559 = vmatpush1.bf16.msra.mxu0 0
    %560 = vmatprep.subr.bf16.mxu0 0
    %561 = vmatpush1.bf16.msra.mxu0 0
    %562 = vmatprep.subr.bf16.mxu0 0
    %563 = vmatpush1.bf16.msra.mxu0 %v540
    %564 = vmatprep.subr.bf16.mxu0 0
    %565 = vmatpush2.bf16.msra.mxu0 0
    %566 = vmatprep.subr.bf16.mxu0 0
    %567 = vmatpush2.bf16.msra.mxu0 0
    %568 = vmatprep.subr.bf16.mxu0 0
    %569 = vmatpush2.bf16.msra.mxu0 0
    %570 = vmatprep.subr.bf16.mxu0 0
    %571 = vmatpush2.bf16.msra.mxu0 0
    %572 = vmatprep.subr.bf16.mxu0 0
    %573 = vmatpush2.bf16.msra.mxu0 0
    %574 = vmatprep.subr.bf16.mxu0 0
    %575 = vmatpush2.bf16.msra.mxu0 0
    %576 = vmatprep.subr.bf16.mxu0 0
    %577 = vmatpush2.bf16.msra.mxu0 0
    %578 = vmatprep.subr.bf16.mxu0 0
    %579 = vmatpush2.bf16.msra.mxu0 0
    %580 = vmatprep.mubr.bf16.mxu0 0
    %581 = vmatmul.mubr.bf16.gmra.mxu0 %v195
    %v582 = vpop.f32.mrf.mxu0
    %v583 = vadd.f32 %v546, %v582
    %v584 = vpop.f32.mrf.mxu0
    %v585 = vpop.f32.mrf.mxu0
    %v586 = vadd.f32 %v546, %v585
    %v587 = vpop.f32.mrf.mxu0
    %588 = vdwg.mxu0
    %vm589 = vcmask 523264
    %590 = vst.msk [vmem:[#allocation12] sm:$0xff] %vm589, %v583
    %591 = vst.msk [vmem:[#allocation12 + $0x8] sm:$0xff] %vm589, %v586
    %594 = vrot.lane.b32.xlu0 %v583, 64
    %v595 = vpop.permute.xlu0 %594
    %596 = vrot.lane.b32.xlu0 %v586, 64
    %v597 = vpop.permute.xlu0 %596
    %600 = vst.msk [vmem:[#allocation14] sm:$0xff] %vm589, %v595
    %601 = vst.msk [vmem:[#allocation14 + $0x8] sm:$0xff] %vm589, %v597
    %v602 = vld [vmem:[#allocation8] sm:$0xff]
    %v603 = vld [vmem:[#allocation8 + $0x8] sm:$0xff]
    %v604 = vmul.f32 %v583, 0.5
    %v605 = vmul.f32 %v586, 0.5
    %v606 = vmul.f32 %v604, 1.442695
    %v607 = vpow.pop %v606
    %v608 = vmul.f32 %v605, 1.442695
    %v609 = vpow.pop %v608
    %612 = vrot.lane.b32.xlu0 %v607, 64
    %v613 = vpop.permute.xlu0 %612
    %614 = vrot.lane.b32.xlu0 %v609, 64
    %v615 = vpop.permute.xlu0 %614
    %v618 = vmul.f32 %v602, %v613
    %v619 = vmul.f32 %v603, %v615
    %v620 = vadd.f32 %v583, %v618
    %v621 = vadd.f32 %v586, %v619
    %622 = vst.msk [vmem:[#allocation11] sm:$0xff] %vm589, %v620
    %623 = vst.msk [vmem:[#allocation11 + $0x8] sm:$0xff] %vm589, %v621
    %v624 = vld [vmem:[%s11] sm:$0xff]
    %v625 = vld [vmem:[%s11 + $0x8] sm:$0xff]
    %vm626 = vcmp.gt.f32.partialorder %v624, 0.0
    %vm627 = vcmp.gt.f32.partialorder %v625, 0.0
    %v628 = vsel %vm626, 1, 0
    %v629 = vsel %vm627, 1, 0
    %630 = vset.pattern.permute.xlu0 0
    %631 = vperm.xlu0 %630, %v628
    %v632 = vpop.permute.xlu0 %631
    %633 = vset.pattern.permute.xlu0 0
    %634 = vperm.xlu0 %633, %v629
    %v635 = vpop.permute.xlu0 %634
    %vm636 = vcmp.eq.s32.totalorder %v632, 1
    %vm637 = vcmp.eq.s32.totalorder %v635, 1
    %v638 = vsel %vm636, %v472, -1e+30
    %v639 = vsel %vm637, %v473, -1e+30
    %v640 = vmax.f32 %v638, %v639
    %v641 = vrot.slane %v640, 4
    %v642 = vmax.f32 %v640, %v641
    %v643 = vrot.slane %v642, 2
    %v644 = vmax.f32 %v642, %v643
    %v645 = vrot.slane %v644, 1
    %v646 = vmax.f32 %v644, %v645
    %647 = vst [vmem:[#allocation2] sm:$0x1] %v646
    %648 = vset.pattern.permute.xlu0 1
    %649 = vperm.xlu0 %648, %v628
    %v650 = vpop.permute.xlu0 %649
    %651 = vset.pattern.permute.xlu0 1
    %652 = vperm.xlu0 %651, %v629
    %v653 = vpop.permute.xlu0 %652
    %vm654 = vcmp.eq.s32.totalorder %v650, 1
    %vm655 = vcmp.eq.s32.totalorder %v653, 1
    %v656 = vsel %vm654, %v472, -1e+30
    %v657 = vsel %vm655, %v473, -1e+30
    %v658 = vmax.f32 %v656, %v657
    %v659 = vrot.slane %v658, 4
    %v660 = vmax.f32 %v658, %v659
    %v661 = vrot.slane %v660, 2
    %v662 = vmax.f32 %v660, %v661
    %v663 = vrot.slane %v662, 1
    %v664 = vmax.f32 %v662, %v663
    %665 = vst [vmem:[#allocation2 + $0x1] sm:$0x1] %v664
    %v666 = vld [vmem:[#allocation2] sm:$0x3]
    %v667 = vpack.c.bf16 %v666, %v666
    %v668 = vld [vmem:[%s12] sm:$0xff]
    %v669 = vld [vmem:[%s12 + $0x8] sm:$0xff]
    %v670 = vld [vmem:[%s12 + $0x10] sm:$0xff]
    %v671 = vld [vmem:[%s12 + $0x18] sm:$0xff]
    %v672 = vld [vmem:[%s12 + $0x20] sm:$0xff]
    %v673 = vld [vmem:[%s12 + $0x28] sm:$0xff]
    %v674 = vld [vmem:[%s12 + $0x30] sm:$0xff]
    %v675 = vld [vmem:[%s12 + $0x38] sm:$0xff]
    %v676 = vld [vmem:[%s12 + $0x40] sm:$0xff]
    %v677 = vld [vmem:[%s12 + $0x48] sm:$0xff]
    %v678 = vld [vmem:[%s12 + $0x50] sm:$0xff]
    %v679 = vld [vmem:[%s12 + $0x58] sm:$0xff]
    %v680 = vld [vmem:[%s12 + $0x60] sm:$0xff]
    %v681 = vld [vmem:[%s12 + $0x68] sm:$0xff]
    %v682 = vld [vmem:[%s12 + $0x70] sm:$0xff]
    %v683 = vld [vmem:[%s12 + $0x78] sm:$0xff]
    %v684 = vld [vmem:[%s12 + $0x80] sm:$0xff]
    %v685 = vld [vmem:[%s12 + $0x88] sm:$0xff]
    %v686 = vld [vmem:[%s12 + $0x90] sm:$0xff]
    %v687 = vld [vmem:[%s12 + $0x98] sm:$0xff]
    %v688 = vld [vmem:[%s12 + $0xa0] sm:$0xff]
    %v689 = vld [vmem:[%s12 + $0xa8] sm:$0xff]
    %v690 = vld [vmem:[%s12 + $0xb0] sm:$0xff]
    %v691 = vld [vmem:[%s12 + $0xb8] sm:$0xff]
    %v692 = vld [vmem:[%s12 + $0xc0] sm:$0xff]
    %v693 = vld [vmem:[%s12 + $0xc8] sm:$0xff]
    %v694 = vld [vmem:[%s12 + $0xd0] sm:$0xff]
    %v695 = vld [vmem:[%s12 + $0xd8] sm:$0xff]
    %v696 = vld [vmem:[%s12 + $0xe0] sm:$0xff]
    %v697 = vld [vmem:[%s12 + $0xe8] sm:$0xff]
    %v698 = vld [vmem:[%s12 + $0xf0] sm:$0xff]
    %v699 = vld [vmem:[%s12 + $0xf8] sm:$0xff]
    %v700 = vld [vmem:[%s12 + $0x100] sm:$0xff]
    %v701 = vld [vmem:[%s12 + $0x108] sm:$0xff]
    %v702 = vld [vmem:[%s12 + $0x110] sm:$0xff]
    %v703 = vld [vmem:[%s12 + $0x118] sm:$0xff]
    %v704 = vld [vmem:[%s12 + $0x120] sm:$0xff]
    %v705 = vld [vmem:[%s12 + $0x128] sm:$0xff]
    %v706 = vld [vmem:[%s12 + $0x130] sm:$0xff]
    %v707 = vld [vmem:[%s12 + $0x138] sm:$0xff]
    %v708 = vld [vmem:[%s12 + $0x140] sm:$0xff]
    %v709 = vld [vmem:[%s12 + $0x148] sm:$0xff]
    %v710 = vld [vmem:[%s12 + $0x150] sm:$0xff]
    %v711 = vld [vmem:[%s12 + $0x158] sm:$0xff]
    %v712 = vld [vmem:[%s12 + $0x160] sm:$0xff]
    %v713 = vld [vmem:[%s12 + $0x168] sm:$0xff]
    %v714 = vld [vmem:[%s12 + $0x170] sm:$0xff]
    %v715 = vld [vmem:[%s12 + $0x178] sm:$0xff]
    %v716 = vld [vmem:[%s12 + $0x180] sm:$0xff]
    %v717 = vld [vmem:[%s12 + $0x188] sm:$0xff]
    %v718 = vld [vmem:[%s12 + $0x190] sm:$0xff]
    %v719 = vld [vmem:[%s12 + $0x198] sm:$0xff]
    %v720 = vld [vmem:[%s12 + $0x1a0] sm:$0xff]
    %v721 = vld [vmem:[%s12 + $0x1a8] sm:$0xff]
    %v722 = vld [vmem:[%s12 + $0x1b0] sm:$0xff]
    %v723 = vld [vmem:[%s12 + $0x1b8] sm:$0xff]
    %v724 = vld [vmem:[%s12 + $0x1c0] sm:$0xff]
    %v725 = vld [vmem:[%s12 + $0x1c8] sm:$0xff]
    %v726 = vld [vmem:[%s12 + $0x1d0] sm:$0xff]
    %v727 = vld [vmem:[%s12 + $0x1d8] sm:$0xff]
    %v728 = vld [vmem:[%s12 + $0x1e0] sm:$0xff]
    %v729 = vld [vmem:[%s12 + $0x1e8] sm:$0xff]
    %v730 = vld [vmem:[%s12 + $0x1f0] sm:$0xff]
    %v731 = vld [vmem:[%s12 + $0x1f8] sm:$0xff]
    %v732 = vld [vmem:[%s12 + $0x200] sm:$0xff]
    %v733 = vld [vmem:[%s12 + $0x208] sm:$0xff]
    %v734 = vld [vmem:[%s12 + $0x210] sm:$0xff]
    %v735 = vld [vmem:[%s12 + $0x218] sm:$0xff]
    %v736 = vld [vmem:[%s12 + $0x220] sm:$0xff]
    %v737 = vld [vmem:[%s12 + $0x228] sm:$0xff]
    %v738 = vld [vmem:[%s12 + $0x230] sm:$0xff]
    %v739 = vld [vmem:[%s12 + $0x238] sm:$0xff]
    %v740 = vld [vmem:[%s12 + $0x240] sm:$0xff]
    %v741 = vld [vmem:[%s12 + $0x248] sm:$0xff]
    %v742 = vld [vmem:[%s12 + $0x250] sm:$0xff]
    %v743 = vld [vmem:[%s12 + $0x258] sm:$0xff]
    %v744 = vld [vmem:[%s12 + $0x260] sm:$0xff]
    %v745 = vld [vmem:[%s12 + $0x268] sm:$0xff]
    %v746 = vld [vmem:[%s12 + $0x270] sm:$0xff]
    %v747 = vld [vmem:[%s12 + $0x278] sm:$0xff]
    %v748 = vld [vmem:[%s12 + $0x280] sm:$0xff]
    %v749 = vld [vmem:[%s12 + $0x288] sm:$0xff]
    %v750 = vld [vmem:[%s12 + $0x290] sm:$0xff]
    %v751 = vld [vmem:[%s12 + $0x298] sm:$0xff]
    %v752 = vld [vmem:[%s12 + $0x2a0] sm:$0xff]
    %v753 = vld [vmem:[%s12 + $0x2a8] sm:$0xff]
    %v754 = vld [vmem:[%s12 + $0x2b0] sm:$0xff]
    %v755 = vld [vmem:[%s12 + $0x2b8] sm:$0xff]
    %v756 = vld [vmem:[%s12 + $0x2c0] sm:$0xff]
    %v757 = vld [vmem:[%s12 + $0x2c8] sm:$0xff]
    %v758 = vld [vmem:[%s12 + $0x2d0] sm:$0xff]
    %v759 = vld [vmem:[%s12 + $0x2d8] sm:$0xff]
    %v760 = vld [vmem:[%s12 + $0x2e0] sm:$0xff]
    %v761 = vld [vmem:[%s12 + $0x2e8] sm:$0xff]
    %v762 = vld [vmem:[%s12 + $0x2f0] sm:$0xff]
    %v763 = vld [vmem:[%s12 + $0x2f8] sm:$0xff]
    %v764 = vld [vmem:[%s12 + $0x300] sm:$0xff]
    %v765 = vld [vmem:[%s12 + $0x308] sm:$0xff]
    %v766 = vld [vmem:[%s12 + $0x310] sm:$0xff]
    %v767 = vld [vmem:[%s12 + $0x318] sm:$0xff]
    %v768 = vld [vmem:[%s12 + $0x320] sm:$0xff]
    %v769 = vld [vmem:[%s12 + $0x328] sm:$0xff]
    %v770 = vld [vmem:[%s12 + $0x330] sm:$0xff]
    %v771 = vld [vmem:[%s12 + $0x338] sm:$0xff]
    %v772 = vld [vmem:[%s12 + $0x340] sm:$0xff]
    %v773 = vld [vmem:[%s12 + $0x348] sm:$0xff]
    %v774 = vld [vmem:[%s12 + $0x350] sm:$0xff]
    %v775 = vld [vmem:[%s12 + $0x358] sm:$0xff]
    %v776 = vld [vmem:[%s12 + $0x360] sm:$0xff]
    %v777 = vld [vmem:[%s12 + $0x368] sm:$0xff]
    %v778 = vld [vmem:[%s12 + $0x370] sm:$0xff]
    %v779 = vld [vmem:[%s12 + $0x378] sm:$0xff]
    %v780 = vld [vmem:[%s12 + $0x380] sm:$0xff]
    %v781 = vld [vmem:[%s12 + $0x388] sm:$0xff]
    %v782 = vld [vmem:[%s12 + $0x390] sm:$0xff]
    %v783 = vld [vmem:[%s12 + $0x398] sm:$0xff]
    %v784 = vld [vmem:[%s12 + $0x3a0] sm:$0xff]
    %v785 = vld [vmem:[%s12 + $0x3a8] sm:$0xff]
    %v786 = vld [vmem:[%s12 + $0x3b0] sm:$0xff]
    %v787 = vld [vmem:[%s12 + $0x3b8] sm:$0xff]
    %v788 = vld [vmem:[%s12 + $0x3c0] sm:$0xff]
    %v789 = vld [vmem:[%s12 + $0x3c8] sm:$0xff]
    %v790 = vld [vmem:[%s12 + $0x3d0] sm:$0xff]
    %v791 = vld [vmem:[%s12 + $0x3d8] sm:$0xff]
    %v792 = vld [vmem:[%s12 + $0x3e0] sm:$0xff]
    %v793 = vld [vmem:[%s12 + $0x3e8] sm:$0xff]
    %v794 = vld [vmem:[%s12 + $0x3f0] sm:$0xff]
    %v795 = vld [vmem:[%s12 + $0x3f8] sm:$0xff]
    %v796 = vpack.c.bf16 %v676, %v668
    %v797 = vpack.c.bf16 %v677, %v669
    %v798 = vpack.c.bf16 %v678, %v670
    %v799 = vpack.c.bf16 %v679, %v671
    %v800 = vpack.c.bf16 %v680, %v672
    %v801 = vpack.c.bf16 %v681, %v673
    %v802 = vpack.c.bf16 %v682, %v674
    %v803 = vpack.c.bf16 %v683, %v675
    %v804 = vpack.c.bf16 %v692, %v684
    %v805 = vpack.c.bf16 %v693, %v685
    %v806 = vpack.c.bf16 %v694, %v686
    %v807 = vpack.c.bf16 %v695, %v687
    %v808 = vpack.c.bf16 %v696, %v688
    %v809 = vpack.c.bf16 %v697, %v689
    %v810 = vpack.c.bf16 %v698, %v690
    %v811 = vpack.c.bf16 %v699, %v691
    %v812 = vpack.c.bf16 %v708, %v700
    %v813 = vpack.c.bf16 %v709, %v701
    %v814 = vpack.c.bf16 %v710, %v702
    %v815 = vpack.c.bf16 %v711, %v703
    %v816 = vpack.c.bf16 %v712, %v704
    %v817 = vpack.c.bf16 %v713, %v705
    %v818 = vpack.c.bf16 %v714, %v706
    %v819 = vpack.c.bf16 %v715, %v707
    %v820 = vpack.c.bf16 %v724, %v716
    %v821 = vpack.c.bf16 %v725, %v717
    %v822 = vpack.c.bf16 %v726, %v718
    %v823 = vpack.c.bf16 %v727, %v719
    %v824 = vpack.c.bf16 %v728, %v720
    %v825 = vpack.c.bf16 %v729, %v721
    %v826 = vpack.c.bf16 %v730, %v722
    %v827 = vpack.c.bf16 %v731, %v723
    %v828 = vpack.c.bf16 %v740, %v732
    %v829 = vpack.c.bf16 %v741, %v733
    %v830 = vpack.c.bf16 %v742, %v734
    %v831 = vpack.c.bf16 %v743, %v735
    %v832 = vpack.c.bf16 %v744, %v736
    %v833 = vpack.c.bf16 %v745, %v737
    %v834 = vpack.c.bf16 %v746, %v738
    %v835 = vpack.c.bf16 %v747, %v739
    %v836 = vpack.c.bf16 %v756, %v748
    %v837 = vpack.c.bf16 %v757, %v749
    %v838 = vpack.c.bf16 %v758, %v750
    %v839 = vpack.c.bf16 %v759, %v751
    %v840 = vpack.c.bf16 %v760, %v752
    %v841 = vpack.c.bf16 %v761, %v753
    %v842 = vpack.c.bf16 %v762, %v754
    %v843 = vpack.c.bf16 %v763, %v755
    %v844 = vpack.c.bf16 %v772, %v764
    %v845 = vpack.c.bf16 %v773, %v765
    %v846 = vpack.c.bf16 %v774, %v766
    %v847 = vpack.c.bf16 %v775, %v767
    %v848 = vpack.c.bf16 %v776, %v768
    %v849 = vpack.c.bf16 %v777, %v769
    %v850 = vpack.c.bf16 %v778, %v770
    %v851 = vpack.c.bf16 %v779, %v771
    %v852 = vpack.c.bf16 %v788, %v780
    %v853 = vpack.c.bf16 %v789, %v781
    %v854 = vpack.c.bf16 %v790, %v782
    %v855 = vpack.c.bf16 %v791, %v783
    %v856 = vpack.c.bf16 %v792, %v784
    %v857 = vpack.c.bf16 %v793, %v785
    %v858 = vpack.c.bf16 %v794, %v786
    %v859 = vpack.c.bf16 %v795, %v787
    %v860 = vld [vmem:[#allocation9] sm:$0xff]
    %v862 = vlaneseq
    %v863 = vshrl.u32 %v862, 7
    %v864 = vsub.s32 0, %v863
    %v865 = vrot.slane %v860, %v864
    %v866 = vlaneseq
    %v867 = vshrl.u32 %v866, 7
    %v868 = vsub.s32 1, %v867
    %v869 = vrot.slane %v860, %v868
    %v870 = vlaneseq
    %v871 = vshrl.u32 %v870, 7
    %v872 = vsub.s32 2, %v871
    %v873 = vrot.slane %v860, %v872
    %v874 = vlaneseq
    %v875 = vshrl.u32 %v874, 7
    %v876 = vsub.s32 3, %v875
    %v877 = vrot.slane %v860, %v876
    %v878 = vlaneseq
    %v879 = vshrl.u32 %v878, 7
    %v880 = vsub.s32 4, %v879
    %v881 = vrot.slane %v860, %v880
    %v882 = vlaneseq
    %v883 = vshrl.u32 %v882, 7
    %v884 = vsub.s32 5, %v883
    %v885 = vrot.slane %v860, %v884
    %v886 = vlaneseq
    %v887 = vshrl.u32 %v886, 7
    %v888 = vsub.s32 6, %v887
    %v889 = vrot.slane %v860, %v888
    %v890 = vlaneseq
    %v891 = vshrl.u32 %v890, 7
    %v892 = vsub.s32 7, %v891
    %v893 = vrot.slane %v860, %v892
    %902 = vmatprep.subr.bf16.mxu0 %v853
    %903 = vmatpush1.bf16.msra.mxu0 %v852
    %904 = vmatprep.subr.bf16.mxu0 %v845
    %905 = vmatpush1.bf16.msra.mxu0 %v844
    %906 = vmatprep.subr.bf16.mxu0 %v837
    %907 = vmatpush1.bf16.msra.mxu0 %v836
    %908 = vmatprep.subr.bf16.mxu0 %v829
    %909 = vmatpush1.bf16.msra.mxu0 %v828
    %910 = vmatprep.subr.bf16.mxu0 %v821
    %911 = vmatpush1.bf16.msra.mxu0 %v820
    %912 = vmatprep.subr.bf16.mxu0 %v813
    %913 = vmatpush1.bf16.msra.mxu0 %v812
    %914 = vmatprep.subr.bf16.mxu0 %v805
    %915 = vmatpush1.bf16.msra.mxu0 %v804
    %916 = vmatprep.subr.bf16.mxu0 %v797
    %917 = vmatpush1.bf16.msra.mxu0 %v796
    %918 = vmatprep.subr.bf16.mxu0 0
    %919 = vmatpush2.bf16.msra.mxu0 0
    %920 = vmatprep.subr.bf16.mxu0 0
    %921 = vmatpush2.bf16.msra.mxu0 0
    %922 = vmatprep.subr.bf16.mxu0 0
    %923 = vmatpush2.bf16.msra.mxu0 0
    %924 = vmatprep.subr.bf16.mxu0 0
    %925 = vmatpush2.bf16.msra.mxu0 0
    %926 = vmatprep.subr.bf16.mxu0 0
    %927 = vmatpush2.bf16.msra.mxu0 0
    %928 = vmatprep.subr.bf16.mxu0 0
    %929 = vmatpush2.bf16.msra.mxu0 0
    %930 = vmatprep.subr.bf16.mxu0 0
    %931 = vmatpush2.bf16.msra.mxu0 0
    %932 = vmatprep.subr.bf16.mxu0 0
    %933 = vmatpush2.bf16.msra.mxu0 0
    %934 = vmatprep.mubr.bf16.mxu0 0
    %935 = vmatmul.mubr.bf16.gmra.mxu0 %v667
    %v936 = vpop.f32.mrf.mxu0
    %v937 = vadd.f32 %v865, %v936
    %v938 = vpop.f32.mrf.mxu0
    %v939 = vadd.f32 %v869, %v938
    %v940 = vpop.f32.mrf.mxu0
    %v941 = vpop.f32.mrf.mxu0
    %942 = vdwg.mxu0
    %943 = vmatprep.subr.bf16.mxu0 %v855
    %944 = vmatpush1.bf16.msra.mxu0 %v854
    %945 = vmatprep.subr.bf16.mxu0 %v847
    %946 = vmatpush1.bf16.msra.mxu0 %v846
    %947 = vmatprep.subr.bf16.mxu0 %v839
    %948 = vmatpush1.bf16.msra.mxu0 %v838
    %949 = vmatprep.subr.bf16.mxu0 %v831
    %950 = vmatpush1.bf16.msra.mxu0 %v830
    %951 = vmatprep.subr.bf16.mxu0 %v823
    %952 = vmatpush1.bf16.msra.mxu0 %v822
    %953 = vmatprep.subr.bf16.mxu0 %v815
    %954 = vmatpush1.bf16.msra.mxu0 %v814
    %955 = vmatprep.subr.bf16.mxu0 %v807
    %956 = vmatpush1.bf16.msra.mxu0 %v806
    %957 = vmatprep.subr.bf16.mxu0 %v799
    %958 = vmatpush1.bf16.msra.mxu0 %v798
    %959 = vmatprep.subr.bf16.mxu0 0
    %960 = vmatpush2.bf16.msra.mxu0 0
    %961 = vmatprep.subr.bf16.mxu0 0
    %962 = vmatpush2.bf16.msra.mxu0 0
    %963 = vmatprep.subr.bf16.mxu0 0
    %964 = vmatpush2.bf16.msra.mxu0 0
    %965 = vmatprep.subr.bf16.mxu0 0
    %966 = vmatpush2.bf16.msra.mxu0 0
    %967 = vmatprep.subr.bf16.mxu0 0
    %968 = vmatpush2.bf16.msra.mxu0 0
    %969 = vmatprep.subr.bf16.mxu0 0
    %970 = vmatpush2.bf16.msra.mxu0 0
    %971 = vmatprep.subr.bf16.mxu0 0
    %972 = vmatpush2.bf16.msra.mxu0 0
    %973 = vmatprep.subr.bf16.mxu0 0
    %974 = vmatpush2.bf16.msra.mxu0 0
    %975 = vmatprep.mubr.bf16.mxu0 0
    %976 = vmatmul.mubr.bf16.gmra.mxu0 %v667
    %v977 = vpop.f32.mrf.mxu0
    %v978 = vadd.f32 %v873, %v977
    %v979 = vpop.f32.mrf.mxu0
    %v980 = vadd.f32 %v877, %v979
    %v981 = vpop.f32.mrf.mxu0
    %v982 = vpop.f32.mrf.mxu0
    %983 = vdwg.mxu0
    %984 = vmatprep.subr.bf16.mxu0 %v857
    %985 = vmatpush1.bf16.msra.mxu0 %v856
    %986 = vmatprep.subr.bf16.mxu0 %v849
    %987 = vmatpush1.bf16.msra.mxu0 %v848
    %988 = vmatprep.subr.bf16.mxu0 %v841
    %989 = vmatpush1.bf16.msra.mxu0 %v840
    %990 = vmatprep.subr.bf16.mxu0 %v833
    %991 = vmatpush1.bf16.msra.mxu0 %v832
    %992 = vmatprep.subr.bf16.mxu0 %v825
    %993 = vmatpush1.bf16.msra.mxu0 %v824
    %994 = vmatprep.subr.bf16.mxu0 %v817
    %995 = vmatpush1.bf16.msra.mxu0 %v816
    %996 = vmatprep.subr.bf16.mxu0 %v809
    %997 = vmatpush1.bf16.msra.mxu0 %v808
    %998 = vmatprep.subr.bf16.mxu0 %v801
    %999 = vmatpush1.bf16.msra.mxu0 %v800
    %1000 = vmatprep.subr.bf16.mxu0 0
    %1001 = vmatpush2.bf16.msra.mxu0 0
    %1002 = vmatprep.subr.bf16.mxu0 0
    %1003 = vmatpush2.bf16.msra.mxu0 0
    %1004 = vmatprep.subr.bf16.mxu0 0
    %1005 = vmatpush2.bf16.msra.mxu0 0
    %1006 = vmatprep.subr.bf16.mxu0 0
    %1007 = vmatpush2.bf16.msra.mxu0 0
    %1008 = vmatprep.subr.bf16.mxu0 0
    %1009 = vmatpush2.bf16.msra.mxu0 0
    %1010 = vmatprep.subr.bf16.mxu0 0
    %1011 = vmatpush2.bf16.msra.mxu0 0
    %1012 = vmatprep.subr.bf16.mxu0 0
    %1013 = vmatpush2.bf16.msra.mxu0 0
    %1014 = vmatprep.subr.bf16.mxu0 0
    %1015 = vmatpush2.bf16.msra.mxu0 0
    %1016 = vmatprep.mubr.bf16.mxu0 0
    %1017 = vmatmul.mubr.bf16.gmra.mxu0 %v667
    %v1018 = vpop.f32.mrf.mxu0
    %v1019 = vadd.f32 %v881, %v1018
    %v1020 = vpop.f32.mrf.mxu0
    %v1021 = vadd.f32 %v885, %v1020
    %v1022 = vpop.f32.mrf.mxu0
    %v1023 = vpop.f32.mrf.mxu0
    %1024 = vdwg.mxu0
    %1025 = vmatprep.subr.bf16.mxu0 %v859
    %1026 = vmatpush1.bf16.msra.mxu0 %v858
    %1027 = vmatprep.subr.bf16.mxu0 %v851
    %1028 = vmatpush1.bf16.msra.mxu0 %v850
    %1029 = vmatprep.subr.bf16.mxu0 %v843
    %1030 = vmatpush1.bf16.msra.mxu0 %v842
    %1031 = vmatprep.subr.bf16.mxu0 %v835
    %1032 = vmatpush1.bf16.msra.mxu0 %v834
    %1033 = vmatprep.subr.bf16.mxu0 %v827
    %1034 = vmatpush1.bf16.msra.mxu0 %v826
    %1035 = vmatprep.subr.bf16.mxu0 %v819
    %1036 = vmatpush1.bf16.msra.mxu0 %v818
    %1037 = vmatprep.subr.bf16.mxu0 %v811
    %1038 = vmatpush1.bf16.msra.mxu0 %v810
    %1039 = vmatprep.subr.bf16.mxu0 %v803
    %1040 = vmatpush1.bf16.msra.mxu0 %v802
    %1041 = vmatprep.subr.bf16.mxu0 0
    %1042 = vmatpush2.bf16.msra.mxu0 0
    %1043 = vmatprep.subr.bf16.mxu0 0
    %1044 = vmatpush2.bf16.msra.mxu0 0
    %1045 = vmatprep.subr.bf16.mxu0 0
    %1046 = vmatpush2.bf16.msra.mxu0 0
    %1047 = vmatprep.subr.bf16.mxu0 0
    %1048 = vmatpush2.bf16.msra.mxu0 0
    %1049 = vmatprep.subr.bf16.mxu0 0
    %1050 = vmatpush2.bf16.msra.mxu0 0
    %1051 = vmatprep.subr.bf16.mxu0 0
    %1052 = vmatpush2.bf16.msra.mxu0 0
    %1053 = vmatprep.subr.bf16.mxu0 0
    %1054 = vmatpush2.bf16.msra.mxu0 0
    %1055 = vmatprep.subr.bf16.mxu0 0
    %1056 = vmatpush2.bf16.msra.mxu0 0
    %1057 = vmatprep.mubr.bf16.mxu0 0
    %1058 = vmatmul.mubr.bf16.gmra.mxu0 %v667
    %v1059 = vpop.f32.mrf.mxu0
    %v1060 = vadd.f32 %v889, %v1059
    %v1061 = vpop.f32.mrf.mxu0
    %v1062 = vadd.f32 %v893, %v1061
    %v1063 = vpop.f32.mrf.mxu0
    %v1064 = vpop.f32.mrf.mxu0
    %1065 = vdwg.mxu0
    %v1066 = vmax.f32 %v937, 0.0
    %v1067 = vmax.f32 %v939, 0.0
    %v1068 = vmax.f32 %v978, 0.0
    %v1069 = vmax.f32 %v980, 0.0
    %v1070 = vmax.f32 %v1019, 0.0
    %v1071 = vmax.f32 %v1021, 0.0
    %v1072 = vmax.f32 %v1060, 0.0
    %v1073 = vmax.f32 %v1062, 0.0
    %v1074 = vpack.c.bf16 %v1066, %v1066
    %v1075 = vpack.c.bf16 %v1067, %v1067
    %v1076 = vpack.c.bf16 %v1068, %v1068
    %v1077 = vpack.c.bf16 %v1069, %v1069
    %v1078 = vpack.c.bf16 %v1070, %v1070
    %v1079 = vpack.c.bf16 %v1071, %v1071
    %v1080 = vpack.c.bf16 %v1072, %v1072
    %v1081 = vpack.c.bf16 %v1073, %v1073
    %v1082 = vld [vmem:[%s14] sm:$0xff]
    %v1083 = vld [vmem:[%s14 + $0x8] sm:$0xff]
    %v1084 = vld [vmem:[%s14 + $0x10] sm:$0xff]
    %v1085 = vld [vmem:[%s14 + $0x18] sm:$0xff]
    %v1086 = vld [vmem:[%s14 + $0x20] sm:$0xff]
    %v1087 = vld [vmem:[%s14 + $0x28] sm:$0xff]
    %v1088 = vld [vmem:[%s14 + $0x30] sm:$0xff]
    %v1089 = vld [vmem:[%s14 + $0x38] sm:$0xff]
    %v1090 = vld [vmem:[%s14 + $0x40] sm:$0xff]
    %v1091 = vld [vmem:[%s14 + $0x48] sm:$0xff]
    %v1092 = vld [vmem:[%s14 + $0x50] sm:$0xff]
    %v1093 = vld [vmem:[%s14 + $0x58] sm:$0xff]
    %v1094 = vld [vmem:[%s14 + $0x60] sm:$0xff]
    %v1095 = vld [vmem:[%s14 + $0x68] sm:$0xff]
    %v1096 = vld [vmem:[%s14 + $0x70] sm:$0xff]
    %v1097 = vld [vmem:[%s14 + $0x78] sm:$0xff]
    %v1098 = vld [vmem:[%s14 + $0x80] sm:$0xff]
    %v1099 = vld [vmem:[%s14 + $0x88] sm:$0xff]
    %v1100 = vld [vmem:[%s14 + $0x90] sm:$0xff]
    %v1101 = vld [vmem:[%s14 + $0x98] sm:$0xff]
    %v1102 = vld [vmem:[%s14 + $0xa0] sm:$0xff]
    %v1103 = vld [vmem:[%s14 + $0xa8] sm:$0xff]
    %v1104 = vld [vmem:[%s14 + $0xb0] sm:$0xff]
    %v1105 = vld [vmem:[%s14 + $0xb8] sm:$0xff]
    %v1106 = vld [vmem:[%s14 + $0xc0] sm:$0xff]
    %v1107 = vld [vmem:[%s14 + $0xc8] sm:$0xff]
    %v1108 = vld [vmem:[%s14 + $0xd0] sm:$0xff]
    %v1109 = vld [vmem:[%s14 + $0xd8] sm:$0xff]
    %v1110 = vld [vmem:[%s14 + $0xe0] sm:$0xff]
    %v1111 = vld [vmem:[%s14 + $0xe8] sm:$0xff]
    %v1112 = vld [vmem:[%s14 + $0xf0] sm:$0xff]
    %v1113 = vld [vmem:[%s14 + $0xf8] sm:$0xff]
    %v1114 = vld [vmem:[%s14 + $0x100] sm:$0xff]
    %v1115 = vld [vmem:[%s14 + $0x108] sm:$0xff]
    %v1116 = vld [vmem:[%s14 + $0x110] sm:$0xff]
    %v1117 = vld [vmem:[%s14 + $0x118] sm:$0xff]
    %v1118 = vld [vmem:[%s14 + $0x120] sm:$0xff]
    %v1119 = vld [vmem:[%s14 + $0x128] sm:$0xff]
    %v1120 = vld [vmem:[%s14 + $0x130] sm:$0xff]
    %v1121 = vld [vmem:[%s14 + $0x138] sm:$0xff]
    %v1122 = vld [vmem:[%s14 + $0x140] sm:$0xff]
    %v1123 = vld [vmem:[%s14 + $0x148] sm:$0xff]
    %v1124 = vld [vmem:[%s14 + $0x150] sm:$0xff]
    %v1125 = vld [vmem:[%s14 + $0x158] sm:$0xff]
    %v1126 = vld [vmem:[%s14 + $0x160] sm:$0xff]
    %v1127 = vld [vmem:[%s14 + $0x168] sm:$0xff]
    %v1128 = vld [vmem:[%s14 + $0x170] sm:$0xff]
    %v1129 = vld [vmem:[%s14 + $0x178] sm:$0xff]
    %v1130 = vld [vmem:[%s14 + $0x180] sm:$0xff]
    %v1131 = vld [vmem:[%s14 + $0x188] sm:$0xff]
    %v1132 = vld [vmem:[%s14 + $0x190] sm:$0xff]
    %v1133 = vld [vmem:[%s14 + $0x198] sm:$0xff]
    %v1134 = vld [vmem:[%s14 + $0x1a0] sm:$0xff]
    %v1135 = vld [vmem:[%s14 + $0x1a8] sm:$0xff]
    %v1136 = vld [vmem:[%s14 + $0x1b0] sm:$0xff]
    %v1137 = vld [vmem:[%s14 + $0x1b8] sm:$0xff]
    %v1138 = vld [vmem:[%s14 + $0x1c0] sm:$0xff]
    %v1139 = vld [vmem:[%s14 + $0x1c8] sm:$0xff]
    %v1140 = vld [vmem:[%s14 + $0x1d0] sm:$0xff]
    %v1141 = vld [vmem:[%s14 + $0x1d8] sm:$0xff]
    %v1142 = vld [vmem:[%s14 + $0x1e0] sm:$0xff]
    %v1143 = vld [vmem:[%s14 + $0x1e8] sm:$0xff]
    %v1144 = vld [vmem:[%s14 + $0x1f0] sm:$0xff]
    %v1145 = vld [vmem:[%s14 + $0x1f8] sm:$0xff]
    %v1146 = vld [vmem:[%s14 + $0x200] sm:$0xff]
    %v1147 = vld [vmem:[%s14 + $0x208] sm:$0xff]
    %v1148 = vld [vmem:[%s14 + $0x210] sm:$0xff]
    %v1149 = vld [vmem:[%s14 + $0x218] sm:$0xff]
    %v1150 = vld [vmem:[%s14 + $0x220] sm:$0xff]
    %v1151 = vld [vmem:[%s14 + $0x228] sm:$0xff]
    %v1152 = vld [vmem:[%s14 + $0x230] sm:$0xff]
    %v1153 = vld [vmem:[%s14 + $0x238] sm:$0xff]
    %v1154 = vld [vmem:[%s14 + $0x240] sm:$0xff]
    %v1155 = vld [vmem:[%s14 + $0x248] sm:$0xff]
    %v1156 = vld [vmem:[%s14 + $0x250] sm:$0xff]
    %v1157 = vld [vmem:[%s14 + $0x258] sm:$0xff]
    %v1158 = vld [vmem:[%s14 + $0x260] sm:$0xff]
    %v1159 = vld [vmem:[%s14 + $0x268] sm:$0xff]
    %v1160 = vld [vmem:[%s14 + $0x270] sm:$0xff]
    %v1161 = vld [vmem:[%s14 + $0x278] sm:$0xff]
    %v1162 = vld [vmem:[%s14 + $0x280] sm:$0xff]
    %v1163 = vld [vmem:[%s14 + $0x288] sm:$0xff]
    %v1164 = vld [vmem:[%s14 + $0x290] sm:$0xff]
    %v1165 = vld [vmem:[%s14 + $0x298] sm:$0xff]
    %v1166 = vld [vmem:[%s14 + $0x2a0] sm:$0xff]
    %v1167 = vld [vmem:[%s14 + $0x2a8] sm:$0xff]
    %v1168 = vld [vmem:[%s14 + $0x2b0] sm:$0xff]
    %v1169 = vld [vmem:[%s14 + $0x2b8] sm:$0xff]
    %v1170 = vld [vmem:[%s14 + $0x2c0] sm:$0xff]
    %v1171 = vld [vmem:[%s14 + $0x2c8] sm:$0xff]
    %v1172 = vld [vmem:[%s14 + $0x2d0] sm:$0xff]
    %v1173 = vld [vmem:[%s14 + $0x2d8] sm:$0xff]
    %v1174 = vld [vmem:[%s14 + $0x2e0] sm:$0xff]
    %v1175 = vld [vmem:[%s14 + $0x2e8] sm:$0xff]
    %v1176 = vld [vmem:[%s14 + $0x2f0] sm:$0xff]
    %v1177 = vld [vmem:[%s14 + $0x2f8] sm:$0xff]
    %v1178 = vld [vmem:[%s14 + $0x300] sm:$0xff]
    %v1179 = vld [vmem:[%s14 + $0x308] sm:$0xff]
    %v1180 = vld [vmem:[%s14 + $0x310] sm:$0xff]
    %v1181 = vld [vmem:[%s14 + $0x318] sm:$0xff]
    %v1182 = vld [vmem:[%s14 + $0x320] sm:$0xff]
    %v1183 = vld [vmem:[%s14 + $0x328] sm:$0xff]
    %v1184 = vld [vmem:[%s14 + $0x330] sm:$0xff]
    %v1185 = vld [vmem:[%s14 + $0x338] sm:$0xff]
    %v1186 = vld [vmem:[%s14 + $0x340] sm:$0xff]
    %v1187 = vld [vmem:[%s14 + $0x348] sm:$0xff]
    %v1188 = vld [vmem:[%s14 + $0x350] sm:$0xff]
    %v1189 = vld [vmem:[%s14 + $0x358] sm:$0xff]
    %v1190 = vld [vmem:[%s14 + $0x360] sm:$0xff]
    %v1191 = vld [vmem:[%s14 + $0x368] sm:$0xff]
    %v1192 = vld [vmem:[%s14 + $0x370] sm:$0xff]
    %v1193 = vld [vmem:[%s14 + $0x378] sm:$0xff]
    %v1194 = vld [vmem:[%s14 + $0x380] sm:$0xff]
    %v1195 = vld [vmem:[%s14 + $0x388] sm:$0xff]
    %v1196 = vld [vmem:[%s14 + $0x390] sm:$0xff]
    %v1197 = vld [vmem:[%s14 + $0x398] sm:$0xff]
    %v1198 = vld [vmem:[%s14 + $0x3a0] sm:$0xff]
    %v1199 = vld [vmem:[%s14 + $0x3a8] sm:$0xff]
    %v1200 = vld [vmem:[%s14 + $0x3b0] sm:$0xff]
    %v1201 = vld [vmem:[%s14 + $0x3b8] sm:$0xff]
    %v1202 = vld [vmem:[%s14 + $0x3c0] sm:$0xff]
    %v1203 = vld [vmem:[%s14 + $0x3c8] sm:$0xff]
    %v1204 = vld [vmem:[%s14 + $0x3d0] sm:$0xff]
    %v1205 = vld [vmem:[%s14 + $0x3d8] sm:$0xff]
    %v1206 = vld [vmem:[%s14 + $0x3e0] sm:$0xff]
    %v1207 = vld [vmem:[%s14 + $0x3e8] sm:$0xff]
    %v1208 = vld [vmem:[%s14 + $0x3f0] sm:$0xff]
    %v1209 = vld [vmem:[%s14 + $0x3f8] sm:$0xff]
    %v1210 = vpack.c.bf16 %v1083, %v1082
    %v1211 = vpack.c.bf16 %v1085, %v1084
    %v1212 = vpack.c.bf16 %v1087, %v1086
    %v1213 = vpack.c.bf16 %v1089, %v1088
    %v1214 = vpack.c.bf16 %v1091, %v1090
    %v1215 = vpack.c.bf16 %v1093, %v1092
    %v1216 = vpack.c.bf16 %v1095, %v1094
    %v1217 = vpack.c.bf16 %v1097, %v1096
    %v1218 = vpack.c.bf16 %v1099, %v1098
    %v1219 = vpack.c.bf16 %v1101, %v1100
    %v1220 = vpack.c.bf16 %v1103, %v1102
    %v1221 = vpack.c.bf16 %v1105, %v1104
    %v1222 = vpack.c.bf16 %v1107, %v1106
    %v1223 = vpack.c.bf16 %v1109, %v1108
    %v1224 = vpack.c.bf16 %v1111, %v1110
    %v1225 = vpack.c.bf16 %v1113, %v1112
    %v1226 = vpack.c.bf16 %v1115, %v1114
    %v1227 = vpack.c.bf16 %v1117, %v1116
    %v1228 = vpack.c.bf16 %v1119, %v1118
    %v1229 = vpack.c.bf16 %v1121, %v1120
    %v1230 = vpack.c.bf16 %v1123, %v1122
    %v1231 = vpack.c.bf16 %v1125, %v1124
    %v1232 = vpack.c.bf16 %v1127, %v1126
    %v1233 = vpack.c.bf16 %v1129, %v1128
    %v1234 = vpack.c.bf16 %v1131, %v1130
    %v1235 = vpack.c.bf16 %v1133, %v1132
    %v1236 = vpack.c.bf16 %v1135, %v1134
    %v1237 = vpack.c.bf16 %v1137, %v1136
    %v1238 = vpack.c.bf16 %v1139, %v1138
    %v1239 = vpack.c.bf16 %v1141, %v1140
    %v1240 = vpack.c.bf16 %v1143, %v1142
    %v1241 = vpack.c.bf16 %v1145, %v1144
    %v1242 = vpack.c.bf16 %v1147, %v1146
    %v1243 = vpack.c.bf16 %v1149, %v1148
    %v1244 = vpack.c.bf16 %v1151, %v1150
    %v1245 = vpack.c.bf16 %v1153, %v1152
    %v1246 = vpack.c.bf16 %v1155, %v1154
    %v1247 = vpack.c.bf16 %v1157, %v1156
    %v1248 = vpack.c.bf16 %v1159, %v1158
    %v1249 = vpack.c.bf16 %v1161, %v1160
    %v1250 = vpack.c.bf16 %v1163, %v1162
    %v1251 = vpack.c.bf16 %v1165, %v1164
    %v1252 = vpack.c.bf16 %v1167, %v1166
    %v1253 = vpack.c.bf16 %v1169, %v1168
    %v1254 = vpack.c.bf16 %v1171, %v1170
    %v1255 = vpack.c.bf16 %v1173, %v1172
    %v1256 = vpack.c.bf16 %v1175, %v1174
    %v1257 = vpack.c.bf16 %v1177, %v1176
    %v1258 = vpack.c.bf16 %v1179, %v1178
    %v1259 = vpack.c.bf16 %v1181, %v1180
    %v1260 = vpack.c.bf16 %v1183, %v1182
    %v1261 = vpack.c.bf16 %v1185, %v1184
    %v1262 = vpack.c.bf16 %v1187, %v1186
    %v1263 = vpack.c.bf16 %v1189, %v1188
    %v1264 = vpack.c.bf16 %v1191, %v1190
    %v1265 = vpack.c.bf16 %v1193, %v1192
    %v1266 = vpack.c.bf16 %v1195, %v1194
    %v1267 = vpack.c.bf16 %v1197, %v1196
    %v1268 = vpack.c.bf16 %v1199, %v1198
    %v1269 = vpack.c.bf16 %v1201, %v1200
    %v1270 = vpack.c.bf16 %v1203, %v1202
    %v1271 = vpack.c.bf16 %v1205, %v1204
    %v1272 = vpack.c.bf16 %v1207, %v1206
    %v1273 = vpack.c.bf16 %v1209, %v1208
    %v1274 = vld [vmem:[%s15] sm:$0x1]
    %v1276 = vlaneseq
    %v1277 = vshrl.u32 %v1276, 7
    %v1278 = vsub.s32 0, %v1277
    %v1279 = vrot.slane %v1274, %v1278
    %1281 = vmatprep.subr.bf16.mxu0 0
    %1282 = vmatpush1.bf16.msra.mxu0 %v1217
    %1283 = vmatprep.subr.bf16.mxu0 0
    %1284 = vmatpush1.bf16.msra.mxu0 %v1216
    %1285 = vmatprep.subr.bf16.mxu0 0
    %1286 = vmatpush1.bf16.msra.mxu0 %v1215
    %1287 = vmatprep.subr.bf16.mxu0 0
    %1288 = vmatpush1.bf16.msra.mxu0 %v1214
    %1289 = vmatprep.subr.bf16.mxu0 0
    %1290 = vmatpush1.bf16.msra.mxu0 %v1213
    %1291 = vmatprep.subr.bf16.mxu0 0
    %1292 = vmatpush1.bf16.msra.mxu0 %v1212
    %1293 = vmatprep.subr.bf16.mxu0 0
    %1294 = vmatpush1.bf16.msra.mxu0 %v1211
    %1295 = vmatprep.subr.bf16.mxu0 0
    %1296 = vmatpush1.bf16.msra.mxu0 %v1210
    %1297 = vmatprep.subr.bf16.mxu0 0
    %1298 = vmatpush2.bf16.msra.mxu0 %v1225
    %1299 = vmatprep.subr.bf16.mxu0 0
    %1300 = vmatpush2.bf16.msra.mxu0 %v1224
    %1301 = vmatprep.subr.bf16.mxu0 0
    %1302 = vmatpush2.bf16.msra.mxu0 %v1223
    %1303 = vmatprep.subr.bf16.mxu0 0
    %1304 = vmatpush2.bf16.msra.mxu0 %v1222
    %1305 = vmatprep.subr.bf16.mxu0 0
    %1306 = vmatpush2.bf16.msra.mxu0 %v1221
    %1307 = vmatprep.subr.bf16.mxu0 0
    %1308 = vmatpush2.bf16.msra.mxu0 %v1220
    %1309 = vmatprep.subr.bf16.mxu0 0
    %1310 = vmatpush2.bf16.msra.mxu0 %v1219
    %1311 = vmatprep.subr.bf16.mxu0 0
    %1312 = vmatpush2.bf16.msra.mxu0 %v1218
    %1313 = vmatprep.mubr.bf16.mxu0 %v1075
    %1314 = vmatmul.mubr.bf16.gmra.mxu0 %v1074
    %v1315 = vpop.f32.mrf.mxu0
    %v1316 = vadd.f32 %v1279, %v1315
    %v1317 = vpop.f32.mrf.mxu0
    %v1318 = vpop.f32.mrf.mxu0
    %v1319 = vpop.f32.mrf.mxu0
    %1320 = vdwg.mxu0
    %1321 = vmatprep.subr.bf16.mxu0 0
    %1322 = vmatpush1.bf16.msra.mxu0 %v1233
    %1323 = vmatprep.subr.bf16.mxu0 0
    %1324 = vmatpush1.bf16.msra.mxu0 %v1232
    %1325 = vmatprep.subr.bf16.mxu0 0
    %1326 = vmatpush1.bf16.msra.mxu0 %v1231
    %1327 = vmatprep.subr.bf16.mxu0 0
    %1328 = vmatpush1.bf16.msra.mxu0 %v1230
    %1329 = vmatprep.subr.bf16.mxu0 0
    %1330 = vmatpush1.bf16.msra.mxu0 %v1229
    %1331 = vmatprep.subr.bf16.mxu0 0
    %1332 = vmatpush1.bf16.msra.mxu0 %v1228
    %1333 = vmatprep.subr.bf16.mxu0 0
    %1334 = vmatpush1.bf16.msra.mxu0 %v1227
    %1335 = vmatprep.subr.bf16.mxu0 0
    %1336 = vmatpush1.bf16.msra.mxu0 %v1226
    %1337 = vmatprep.subr.bf16.mxu0 0
    %1338 = vmatpush2.bf16.msra.mxu0 %v1241
    %1339 = vmatprep.subr.bf16.mxu0 0
    %1340 = vmatpush2.bf16.msra.mxu0 %v1240
    %1341 = vmatprep.subr.bf16.mxu0 0
    %1342 = vmatpush2.bf16.msra.mxu0 %v1239
    %1343 = vmatprep.subr.bf16.mxu0 0
    %1344 = vmatpush2.bf16.msra.mxu0 %v1238
    %1345 = vmatprep.subr.bf16.mxu0 0
    %1346 = vmatpush2.bf16.msra.mxu0 %v1237
    %1347 = vmatprep.subr.bf16.mxu0 0
    %1348 = vmatpush2.bf16.msra.mxu0 %v1236
    %1349 = vmatprep.subr.bf16.mxu0 0
    %1350 = vmatpush2.bf16.msra.mxu0 %v1235
    %1351 = vmatprep.subr.bf16.mxu0 0
    %1352 = vmatpush2.bf16.msra.mxu0 %v1234
    %1353 = vmatprep.mubr.bf16.mxu0 %v1077
    %1354 = vmatmul.mubr.bf16.gmra.mxu0 %v1076
    %v1355 = vpop.f32.mrf.mxu0
    %v1356 = vadd.f32 %v1316, %v1355
    %v1357 = vpop.f32.mrf.mxu0
    %v1358 = vpop.f32.mrf.mxu0
    %v1359 = vpop.f32.mrf.mxu0
    %1360 = vdwg.mxu0
    %1361 = vmatprep.subr.bf16.mxu0 0
    %1362 = vmatpush1.bf16.msra.mxu0 %v1249
    %1363 = vmatprep.subr.bf16.mxu0 0
    %1364 = vmatpush1.bf16.msra.mxu0 %v1248
    %1365 = vmatprep.subr.bf16.mxu0 0
    %1366 = vmatpush1.bf16.msra.mxu0 %v1247
    %1367 = vmatprep.subr.bf16.mxu0 0
    %1368 = vmatpush1.bf16.msra.mxu0 %v1246
    %1369 = vmatprep.subr.bf16.mxu0 0
    %1370 = vmatpush1.bf16.msra.mxu0 %v1245
    %1371 = vmatprep.subr.bf16.mxu0 0
    %1372 = vmatpush1.bf16.msra.mxu0 %v1244
    %1373 = vmatprep.subr.bf16.mxu0 0
    %1374 = vmatpush1.bf16.msra.mxu0 %v1243
    %1375 = vmatprep.subr.bf16.mxu0 0
    %1376 = vmatpush1.bf16.msra.mxu0 %v1242
    %1377 = vmatprep.subr.bf16.mxu0 0
    %1378 = vmatpush2.bf16.msra.mxu0 %v1257
    %1379 = vmatprep.subr.bf16.mxu0 0
    %1380 = vmatpush2.bf16.msra.mxu0 %v1256
    %1381 = vmatprep.subr.bf16.mxu0 0
    %1382 = vmatpush2.bf16.msra.mxu0 %v1255
    %1383 = vmatprep.subr.bf16.mxu0 0
    %1384 = vmatpush2.bf16.msra.mxu0 %v1254
    %1385 = vmatprep.subr.bf16.mxu0 0
    %1386 = vmatpush2.bf16.msra.mxu0 %v1253
    %1387 = vmatprep.subr.bf16.mxu0 0
    %1388 = vmatpush2.bf16.msra.mxu0 %v1252
    %1389 = vmatprep.subr.bf16.mxu0 0
    %1390 = vmatpush2.bf16.msra.mxu0 %v1251
    %1391 = vmatprep.subr.bf16.mxu0 0
    %1392 = vmatpush2.bf16.msra.mxu0 %v1250
    %1393 = vmatprep.mubr.bf16.mxu0 %v1079
    %1394 = vmatmul.mubr.bf16.gmra.mxu0 %v1078
    %v1395 = vpop.f32.mrf.mxu0
    %v1396 = vadd.f32 %v1356, %v1395
    %v1397 = vpop.f32.mrf.mxu0
    %v1398 = vpop.f32.mrf.mxu0
    %v1399 = vpop.f32.mrf.mxu0
    %1400 = vdwg.mxu0
    %1401 = vmatprep.subr.bf16.mxu0 0
    %1402 = vmatpush1.bf16.msra.mxu0 %v1265
    %1403 = vmatprep.subr.bf16.mxu0 0
    %1404 = vmatpush1.bf16.msra.mxu0 %v1264
    %1405 = vmatprep.subr.bf16.mxu0 0
    %1406 = vmatpush1.bf16.msra.mxu0 %v1263
    %1407 = vmatprep.subr.bf16.mxu0 0
    %1408 = vmatpush1.bf16.msra.mxu0 %v1262
    %1409 = vmatprep.subr.bf16.mxu0 0
    %1410 = vmatpush1.bf16.msra.mxu0 %v1261
    %1411 = vmatprep.subr.bf16.mxu0 0
    %1412 = vmatpush1.bf16.msra.mxu0 %v1260
    %1413 = vmatprep.subr.bf16.mxu0 0
    %1414 = vmatpush1.bf16.msra.mxu0 %v1259
    %1415 = vmatprep.subr.bf16.mxu0 0
    %1416 = vmatpush1.bf16.msra.mxu0 %v1258
    %1417 = vmatprep.subr.bf16.mxu0 0
    %1418 = vmatpush2.bf16.msra.mxu0 %v1273
    %1419 = vmatprep.subr.bf16.mxu0 0
    %1420 = vmatpush2.bf16.msra.mxu0 %v1272
    %1421 = vmatprep.subr.bf16.mxu0 0
    %1422 = vmatpush2.bf16.msra.mxu0 %v1271
    %1423 = vmatprep.subr.bf16.mxu0 0
    %1424 = vmatpush2.bf16.msra.mxu0 %v1270
    %1425 = vmatprep.subr.bf16.mxu0 0
    %1426 = vmatpush2.bf16.msra.mxu0 %v1269
    %1427 = vmatprep.subr.bf16.mxu0 0
    %1428 = vmatpush2.bf16.msra.mxu0 %v1268
    %1429 = vmatprep.subr.bf16.mxu0 0
    %1430 = vmatpush2.bf16.msra.mxu0 %v1267
    %1431 = vmatprep.subr.bf16.mxu0 0
    %1432 = vmatpush2.bf16.msra.mxu0 %v1266
    %1433 = vmatprep.mubr.bf16.mxu0 %v1081
    %1434 = vmatmul.mubr.bf16.gmra.mxu0 %v1080
    %v1435 = vpop.f32.mrf.mxu0
    %v1436 = vadd.f32 %v1396, %v1435
    %v1437 = vpop.f32.mrf.mxu0
    %v1438 = vpop.f32.mrf.mxu0
    %v1439 = vpop.f32.mrf.mxu0
    %1440 = vdwg.mxu0
    %vm1441 = vcmask 254976
    %1442 = vst.msk [vmem:[#allocation15] sm:$0x3] %vm1441, %v1436
    // Predicated region
    $region82: #{tpu_custom_call.1} parent=1 // pred_check
      _
    $region83: #{tpu_custom_call.1} parent=1 // pred_check_branch
      %1444 = sbr.rel (0) target = $region85
    $region84: #{tpu_custom_call.1} parent=1 // pred_region
      %s1446 = ssub.s32 256, 256
      %1447 = vsyncadd [#allocation5], %s1446
      %s1448 = sshll.u32 [#allocation11], 4
      %s1449 = int_to_ptr.vmem [resolvable:$true] %s1448
      %1454 = dma.vmem_to_hbm [thread:$0]  %s1449, 256, %s16, [#allocation5], 128, 128, 8
    $region85: #{tpu_custom_call.1} parent=1 // pred_fallthru
      _
    // Predicated region
    $region86: #{tpu_custom_call.1} parent=1 // pred_check
      _
    $region87: #{tpu_custom_call.1} parent=1 // pred_check_branch
      %1456 = sbr.rel (0) target = $region89
    $region88: #{tpu_custom_call.1} parent=1 // pred_region
      %s1458 = ssub.s32 256, 256
      %1459 = vsyncadd [#allocation13], %s1458
      %s1460 = sshll.u32 [#allocation12], 4
      %s1461 = int_to_ptr.vmem [resolvable:$true] %s1460
      %1466 = dma.vmem_to_hbm [thread:$0]  %s1461, 256, %s17, [#allocation13], 128, 128, 8
    $region89: #{tpu_custom_call.1} parent=1 // pred_fallthru
      _
    // Predicated region
    $region90: #{tpu_custom_call.1} parent=1 // pred_check
      _
    $region91: #{tpu_custom_call.1} parent=1 // pred_check_branch
      %1468 = sbr.rel (0) target = $region93
    $region92: #{tpu_custom_call.1} parent=1 // pred_region
      %s1470 = ssub.s32 256, 256
      %1471 = vsyncadd [#allocation13], %s1470
      %s1472 = sshll.u32 [#allocation14], 4
      %s1473 = int_to_ptr.vmem [resolvable:$true] %s1472
      %1478 = dma.vmem_to_hbm [thread:$0]  %s1473, 256, %s18, [#allocation13], 128, 128, 8
    $region93: #{tpu_custom_call.1} parent=1 // pred_fallthru
      _
    // Predicated region
    $region94: #{tpu_custom_call.1} parent=1 // pred_check
      _
    $region95: #{tpu_custom_call.1} parent=1 // pred_check_branch
      %1480 = sbr.rel (0) target = $region97
    $region96: #{tpu_custom_call.1} parent=1 // pred_region
      %s1482 = ssub.s32 32, 32
      %1483 = vsyncadd [#allocation16], %s1482
      %s1485 = sshll.u32 [#allocation15], 4
      %s1486 = int_to_ptr.vmem [resolvable:$true] %s1485
      %1488 = dma.vmem_to_hbm [thread:$0]  %s1486, 32, %s19, [#allocation16]
    $region97: #{tpu_custom_call.1} parent=1 // pred_fallthru
      _
    // Predicated region
    $region98: #{tpu_custom_call.1} parent=1 // pred_check
      _
    $region99: #{tpu_custom_call.1} parent=1 // pred_check_branch
      %1490 = sbr.rel (0) target = $region101
    $region100: #{tpu_custom_call.1} parent=1 // pred_region
      %1491 = dma.done [#allocation5], 256
    $region101: #{tpu_custom_call.1} parent=1 // pred_fallthru
      _
    // Predicated region
    $region102: #{tpu_custom_call.1} parent=1 // pred_check
      _
    $region103: #{tpu_custom_call.1} parent=1 // pred_check_branch
      %1493 = sbr.rel (0) target = $region105
    $region104: #{tpu_custom_call.1} parent=1 // pred_region
      %1494 = dma.done [#allocation13], 256
    $region105: #{tpu_custom_call.1} parent=1 // pred_fallthru
      _
    // Predicated region
    $region106: #{tpu_custom_call.1} parent=1 // pred_check
      _
    $region107: #{tpu_custom_call.1} parent=1 // pred_check_branch
      %1496 = sbr.rel (0) target = $region109
    $region108: #{tpu_custom_call.1} parent=1 // pred_region
      %1497 = dma.done [#allocation13], 256
    $region109: #{tpu_custom_call.1} parent=1 // pred_fallthru
      _
    // Predicated region
    $region110: #{tpu_custom_call.1} parent=1 // pred_check
      _
    $region111: #{tpu_custom_call.1} parent=1 // pred_check_branch
      %1499 = sbr.rel (0) target = $region113
    $region112: #{tpu_custom_call.1} parent=1 // pred_region
      %1500 = dma.done [#allocation16], 32
    $region113: #{tpu_custom_call.1} parent=1 // pred_fallthru
      _
    %1501 = vsyncpa [#allocation4], 1
    %1502 = vsyncpa [#allocation7], 1
    %1503 = vsyncpa [#allocation10], 1
    %1504 = vsyncpa [#allocation5], 1
    %1505 = vsyncpa [#allocation13], 1
    %1506 = vsyncpa [#allocation16], 1

</llo_original>
